<compile_context>
chip_gen: v7x
topology: tpu7x:2x2x1
jax: 0.10.0
libtpu: 0.0.40
codegen_flags: <defaults>
</compile_context>

<pallas_src>
import math

import numpy as np
import jax
import jax.numpy as jnp
from jax.experimental import pallas as pl
from jax.experimental.pallas import tpu as pltpu

# ----------------------------- configuration -------------------------------
N_LIST = [3, 8, 16, 16]
T_KERN = [5, 3, 3]
S_LIST = [2, 1, 1]
P_LIST = [0, 1, 1]
T_IN = 64
FS_IN = 250.0
M_ELEC = 9          # input electrode rows
ICA = 4
EMB = 8
H_LIST = [3, 2]
COMPRESS = 4
MID = 16
NUM_PERSON = 35
NUM_FREQ = 40
BATCH = 2


def compute_ts_fs():
    TS, FS = [], []
    tmp, tmpF = T_IN, FS_IN
    for i in range(len(N_LIST) - 1):
        TS.append(tmp)
        FS.append(tmpF)
        new_tmp = 1 + int(math.floor((tmp - T_KERN[i] + 2 * P_LIST[i]) / S_LIST[i]))
        tmpF = tmpF / tmp * new_tmp
        tmp = new_tmp
    TS.append(tmp)
    FS.append(tmpF)
    return TS, FS


TS, FS = compute_ts_fs()                 # TS = [64, 30, 30, 30]
TQ = TS[1]                               # 30: time length after stride-2 pre conv
FLAT = N_LIST[-1] * TS[-1]               # 480
NTAP = N_LIST[0] * T_KERN[0]             # 15 taps of the pre conv
TAPROWS = BATCH * M_ELEC * NTAP          # 270 rows of the im2col operand
TAPROWS_PAD = TAPROWS + 2                # 272 (+ ones row for bias fold, + zero pad)
PREROWS = BATCH * N_LIST[1] * M_ELEC     # 144 rows of pre-conv output (b, c1, m)
MIXROWS = BATCH * N_LIST[1] * ICA        # 64 rows after electrode mixing (b, c1, n)
C2B = BATCH * N_LIST[2]                  # 32 batch-folded channels after chn conv
C3B = BATCH * N_LIST[3]                  # 32 batch-folded channels after tempo conv


# ----------------------------- Pallas kernel --------------------------------
def _gnet_kernel(taps_ref, wmix_ref, wpre_ref, wconvs_ref, cbias_ref,
                 wt256_ref, wse_ref, wn16_ref, wfc2_ref,
                 out_ref, feat_ref):
    f32 = jnp.float32

    # --- preprocess conv (1x5, stride 2) + bias (folded) + ReLU: ONE dot -----
    pre = jnp.maximum(
        jnp.dot(wpre_ref[...], taps_ref[...], preferred_element_type=f32), 0.0)
    # pre: (144, 30), rows ordered (b, c1, m)

    # --- electrode mixing (mean-subtract/append folded into the per-forward
    #     block-diagonal idp_eff weight): ONE dot ------------------------------
    xp = jnp.dot(wmix_ref[...], pre, preferred_element_type=f32)   # (64,30) rows (b,c1,n)

    def stack3(v):
        """[v(t-1) | v(t) | v(t+1)] stacked along sublanes, zero-padded ends."""
        z = jnp.zeros((v.shape[0], 1), f32)
        vm1 = jnp.concatenate([z, v[:, :TQ - 1]], axis=1)          # v[t-1]
        vp1 = jnp.concatenate([v[:, 1:], z], axis=1)               # v[t+1]
        return jnp.concatenate([vm1, v, vp1], axis=0)              # whole-vreg pieces

    # --- channel-combination conv ((ica,3), pad (0,1)): ONE block-diag dot ---
    xc = jnp.dot(wconvs_ref[:, 0:192], stack3(xp), preferred_element_type=f32)
    xc = jnp.maximum(xc + cbias_ref[0:C2B, :], 0.0)                # (32,30) rows (b,c2)

    def freq_block(x, pspc, fc1_bd, fc2_bd, wc_bd):
        """Freq_Block: CCA corr + SE gate + softmax attention (batch in sublanes)."""
        proj = jnp.dot(x, pspc, preferred_element_type=f32)        # (32,256)
        sp = proj[:, 0:NUM_FREQ]                                   # 128-aligned slices
        cp = proj[:, 128:128 + NUM_FREQ]
        xy = sp * sp + cp * cp                                     # corr (32,40)
        # SE branch
        y = jnp.mean(xy, axis=1, keepdims=True)                    # (32,1)
        h = jnp.maximum(jnp.dot(fc1_bd, y, preferred_element_type=f32), 0.0)
        z = jnp.dot(fc2_bd, h, preferred_element_type=f32)
        gate = 0.5 * (1.0 + jnp.tanh(0.5 * z))                     # sigmoid, EUP tanh
        # attention branch: softmax over freqs, channel-weighted sum
        mx = jnp.max(xy, axis=1, keepdims=True)
        ex = jnp.exp(xy - mx)
        sm = ex * pl.reciprocal(jnp.sum(ex, axis=1, keepdims=True), approx=True)
        att = jnp.dot(wc_bd, sm, preferred_element_type=f32)       # (2,40)
        return x * gate, att

    # --- Freq_Block 1 + residual ReLU ----------------------------------------
    scaled1, att1 = freq_block(xc, wt256_ref[0:TQ, :], wse_ref[0:8, :],
                               wfc2_ref[0:C2B, :], wse_ref[16:18, :])
    xr = jnp.maximum(xc + scaled1, 0.0)                            # dropout = identity

    # --- tempo conv ((1,3), pad (0,1)): ONE block-diag dot --------------------
    xt = jnp.dot(wconvs_ref[:, 256:352], stack3(xr), preferred_element_type=f32)
    xt = jnp.maximum(xt + cbias_ref[C2B:C2B + C3B, :], 0.0)        # (32,30) rows (b,c3)

    # --- Freq_Block 2 + residual ReLU (downsample = Identity, S=1) -----------
    scaled2, att2 = freq_block(xt, wt256_ref[32:32 + TQ, :], wse_ref[8:16, :],
                               wfc2_ref[C2B:C2B + C3B, :], wse_ref[24:26, :])
    xr2 = jnp.maximum(scaled2 + xr, 0.0)                           # (32,30)
    feat_ref[...] = xr2

    # --- FC head: fused (c,t) contraction via mask-diagonal trick (3 dots) ---
    p_full = jnp.dot(xr2, wt256_ref[64:64 + TQ, :], preferred_element_type=f32)
    p_mask = p_full * wt256_ref[96:128, :]                         # keep c == c' blocks
    q = jnp.dot(p_mask, wn16_ref[0:256, :], preferred_element_type=f32)   # (32,16)
    x_fc = (jnp.dot(wse_ref[32:34, :], q, preferred_element_type=f32)
            + wn16_ref[336:337, :])                                # (2,16) + fc_b

    # --- attention head --------------------------------------------------------
    att_lin = (wn16_ref[344:345, :]
               + jnp.dot(jnp.maximum(att1, 0.0), wn16_ref[256:296, :],
                         preferred_element_type=f32)
               + jnp.dot(jnp.maximum(att2, 0.0), wn16_ref[296:336, :],
                         preferred_element_type=f32))              # (2,16)

    out_ref[:, 0:MID] = x_fc
    out_ref[:, MID:2 * MID] = att_lin


# ------------------------------ parameter init ------------------------------
def make_pe(H, TN, Fs):
    freqs = jnp.asarray(np.linspace(8.0, 15.8, NUM_FREQ), jnp.float32)
    position = jnp.arange(TN, dtype=jnp.float32)[:, None] / Fs
    sins, coss = [], []
    for i in range(H):
        arg = 2.0 * math.pi * position * freqs[None, :] * (i + 1)
        sins.append(jnp.sin(arg)[None])
        coss.append(jnp.cos(arg)[None])
    return jnp.concatenate(sins, 0), jnp.concatenate(coss, 0)


def init_freq_block(key, C, reduction, TN, Fs, H):
    k1, k2, k3 = jax.random.split(key, 3)
    pe_sin, pe_cos = make_pe(H, TN, Fs)
    return dict(
        pe_sin=pe_sin, pe_cos=pe_cos,
        wy=jax.random.normal(k1, (H,), jnp.float32),
        wc=jnp.ones((C,), jnp.float32) / C,
        fc1=0.3 * jax.random.normal(k2, (C // reduction, C), jnp.float32),
        fc2=0.3 * jax.random.normal(k3, (C, C // reduction), jnp.float32),
    )


def init_params(key):
    ks = jax.random.split(key, 12)
    params = dict(
        emb_table=0.3 * jax.random.normal(ks[0], (NUM_PERSON, EMB), jnp.float32),
        id_op_w=0.2 * jax.random.normal(ks[1], ((M_ELEC + 1) * ICA, EMB), jnp.float32),
        pre_w=0.2 * jax.random.normal(ks[2], (N_LIST[1], N_LIST[0], 1, T_KERN[0]), jnp.float32),
        pre_b=0.05 * jax.random.normal(ks[3], (N_LIST[1],), jnp.float32),
        chn_w=0.2 * jax.random.normal(ks[4], (N_LIST[2], N_LIST[1], ICA, T_KERN[1]), jnp.float32),
        chn_b=0.05 * jax.random.normal(ks[5], (N_LIST[2],), jnp.float32),
        tmp_w=0.2 * jax.random.normal(ks[6], (N_LIST[3], N_LIST[2], 1, T_KERN[2]), jnp.float32),
        tmp_b=0.05 * jax.random.normal(ks[7], (N_LIST[3],), jnp.float32),
        fc_w=0.1 * jax.random.normal(ks[8], (MID, FLAT), jnp.float32),
        fc_b=0.05 * jax.random.normal(ks[9], (MID,), jnp.float32),
        att_w=0.1 * jax.random.normal(ks[10], (MID, NUM_FREQ * (len(T_KERN) - 1)), jnp.float32),
        att_b=0.05 * jax.random.normal(ks[11], (MID,), jnp.float32),
    )
    kfa, kfb = jax.random.split(jax.random.fold_in(key, 99), 2)
    params['chn_att'] = init_freq_block(kfa, N_LIST[2], COMPRESS, TS[2], FS[2], H_LIST[0])
    params['tempo_att'] = init_freq_block(kfb, N_LIST[3], COMPRESS, TS[3], FS[2], H_LIST[1])
    return params


def prepare_params(p):
    """One-time re-layout of weights into block-diagonal / packed-slab form."""
    f32 = jnp.float32
    eye_b = jnp.eye(BATCH, dtype=f32)

    # --- pre-conv block-diagonal weight; conv bias folded as an extra column --
    w_pre2 = p['pre_w'].reshape(N_LIST[1], NTAP)                          # (8,15)
    pre_bd = jnp.einsum('cj,bB,mM->bcmBMj', w_pre2, eye_b,
                        jnp.eye(M_ELEC, dtype=f32)).reshape(PREROWS, TAPROWS)
    bias_col = jnp.broadcast_to(p['pre_b'][None, :, None],
                                (BATCH, N_LIST[1], M_ELEC)).reshape(PREROWS, 1)
    w_pre = jnp.concatenate(
        [pre_bd, bias_col, jnp.zeros((PREROWS, 1), f32)], axis=1)         # (144,272)

    # --- channel-combination / tempo conv block-diag weights (one dot each) ---
    chn_bd = jnp.concatenate(
        [jnp.kron(eye_b, p['chn_w'][:, :, :, k].reshape(N_LIST[2], N_LIST[1] * ICA))
         for k in range(T_KERN[1])], axis=1)                              # (32,192)
    tmp_bd = jnp.concatenate(
        [jnp.kron(eye_b, p['tmp_w'][:, :, 0, k]) for k in range(T_KERN[2])],
        axis=1)                                                           # (32,96)
    w_convs = jnp.zeros((C2B, 352), f32)
    w_convs = w_convs.at[:, 0:192].set(chn_bd).at[:, 256:352].set(tmp_bd)

    conv_bias = jnp.concatenate(
        [jnp.tile(p['chn_b'], (BATCH,)).reshape(-1, 1),
         jnp.tile(p['tmp_b'], (BATCH,)).reshape(-1, 1)], axis=0)          # (64,1)

    # --- Freq_Block weights ----------------------------------------------------
    def freq_prep(fb):
        tn = fb['pe_sin'].shape[1]
        ps = jnp.einsum('htf,h->tf', fb['pe_sin'], fb['wy'])
        pc = jnp.einsum('htf,h->tf', fb['pe_cos'], fb['wy'])
        pspc = jnp.zeros((tn, 256), f32)
        pspc = pspc.at[:, 0:NUM_FREQ].set(ps).at[:, 128:128 + NUM_FREQ].set(pc)
        return dict(pspc=pspc,                                   # (30,256), cos @ lane 128
                    fc1_bd=jnp.kron(eye_b, fb['fc1']),           # (8,32)
                    fc2_bd=jnp.kron(eye_b, fb['fc2']),           # (32,8)
                    wc_bd=jnp.kron(eye_b, fb['wc'][None, :]))    # (2,32)

    fb1 = freq_prep(p['chn_att'])
    fb2 = freq_prep(p['tempo_att'])

    # --- FC head (mask-diagonal trick) ------------------------------------------
    fc3 = p['fc_w'].reshape(MID, N_LIST[3], TS[3])                        # [j,c,t]
    w_big = jnp.transpose(fc3, (2, 1, 0)).reshape(TS[3], N_LIST[3] * MID)  # (30,256)
    m_sel = jnp.tile(jnp.kron(jnp.eye(N_LIST[3], dtype=f32),
                              jnp.ones((1, MID), f32)), (BATCH, 1))       # (32,256)
    t_sel = jnp.tile(jnp.eye(MID, dtype=f32), (N_LIST[3], 1))             # (256,16)
    s_row = jnp.kron(eye_b, jnp.ones((1, N_LIST[3]), f32))                # (2,32)

    # --- packed slabs (static 8-row / 128-lane aligned offsets) -----------------
    wt256 = jnp.zeros((128, 256), f32)
    wt256 = wt256.at[0:TQ, :].set(fb1['pspc'])
    wt256 = wt256.at[32:32 + TQ, :].set(fb2['pspc'])
    wt256 = wt256.at[64:64 + TQ, :].set(w_big)
    wt256 = wt256.at[96:128, :].set(m_sel)

    wse = jnp.zeros((40, 32), f32)
    wse = wse.at[0:8, :].set(fb1['fc1_bd']).at[8:16, :].set(fb2['fc1_bd'])
    wse = wse.at[16:18, :].set(fb1['wc_bd']).at[24:26, :].set(fb2['wc_bd'])
    wse = wse.at[32:34, :].set(s_row)

    wn16 = jnp.zeros((352, 16), f32)
    wn16 = wn16.at[0:256, :].set(t_sel)
    wn16 = wn16.at[256:296, :].set(p['att_w'][:, :NUM_FREQ].T)
    wn16 = wn16.at[296:336, :].set(p['att_w'][:, NUM_FREQ:].T)
    wn16 = wn16.at[336:337, :].set(p['fc_b'].reshape(1, MID))
    wn16 = wn16.at[344:345, :].set(p['att_b'].reshape(1, MID))

    wfc2 = jnp.concatenate([fb1['fc2_bd'], fb2['fc2_bd']], axis=0)        # (64,8)

    return dict(emb_table=p['emb_table'], id_op_w=p['id_op_w'],
                w_pre=w_pre, w_convs=w_convs, conv_bias=conv_bias,
                wt256=wt256, wse=wse, wn16=wn16, wfc2=wfc2)


# --------------------------------- forward ----------------------------------
def _fullspec(shape):
    zeros = (0,) * len(shape)
    return pl.BlockSpec(shape, lambda i: zeros)


def g_net_forward(pp, x, ids):
    assert x.shape[0] == BATCH
    x = x.astype(jnp.float32)

    # --- id path (tiny, data-dependent gather -> stays in XLA) ----------------
    e = pp['emb_table'][ids]                                      # (B, EMB)
    nrm = jnp.sqrt(jnp.sum(e * e, axis=1, keepdims=True))
    e = jnp.where(nrm > 1.0, e / (nrm + 1e-7), e)                 # max_norm=1 renorm
    idp = (e @ pp['id_op_w'].T).reshape(BATCH, M_ELEC + 1, ICA)   # (B, M+1, ICA)
    idpt = jnp.transpose(idp, (0, 2, 1))                          # (B, ICA, M+1)
    head = idpt[:, :, :M_ELEC]
    last = idpt[:, :, M_ELEC:]
    idp_eff = head + (last - jnp.sum(head, axis=2, keepdims=True)) / M_ELEC

    # per-forward block-diagonal electrode-mixing weight (64, 144)
    eye_b = jnp.eye(BATCH, dtype=jnp.float32)
    eye_c = jnp.eye(N_LIST[1], dtype=jnp.float32)
    w_mix = jnp.einsum('bnm,bB,cC->bcnBCm', idp_eff, eye_b, eye_c).reshape(
        MIXROWS, PREROWS)

    # --- im2col of the stride-2 preprocess conv (+ ones row for bias fold) ----
    taps = jnp.stack(
        [x[:, j // T_KERN[0], :, (j % T_KERN[0])::2][:, :, :TQ]
         for j in range(NTAP)], axis=2)                           # (B, M, 15, TQ)
    taps = taps.reshape(TAPROWS, TQ)
    taps = jnp.concatenate(
        [taps, jnp.ones((1, TQ), jnp.float32), jnp.zeros((1, TQ), jnp.float32)],
        axis=0)                                                   # (272, 30)

    out2, feat = pl.pallas_call(
        _gnet_kernel,
        out_shape=(jax.ShapeDtypeStruct((BATCH, 2 * MID), jnp.float32),
                   jax.ShapeDtypeStruct((C3B, TS[3]), jnp.float32)),
        grid=(1,),
        in_specs=[
            _fullspec((TAPROWS_PAD, TQ)),        # taps (im2col + ones row)
            _fullspec((MIXROWS, PREROWS)),       # w_mix (block-diag idp_eff)
            _fullspec((PREROWS, TAPROWS_PAD)),   # w_pre (block-diag pre conv + bias)
            _fullspec((C2B, 352)),               # w_convs (chn_bd | tmp_bd)
            _fullspec((C2B + C3B, 1)),           # conv biases
            _fullspec((128, 256)),               # pspc1 | pspc2 | w_big | m_sel
            _fullspec((40, 32)),                 # fc1_bd x2 | wc_bd x2 | s_row
            _fullspec((352, 16)),                # t_sel | att_w1 | att_w2 | fc_b | att_b
            _fullspec((C2B + C3B, 8)),           # fc2_bd x2
        ],
        out_specs=(_fullspec((BATCH, 2 * MID)), _fullspec((C3B, TS[3]))),
        compiler_params=pltpu.CompilerParams(dimension_semantics=("arbitrary",)),
    )(taps, w_mix, pp['w_pre'], pp['w_convs'], pp['conv_bias'],
      pp['wt256'], pp['wse'], pp['wn16'], pp['wfc2'])

    att_out = out2[:, MID:]                      # att_lin is the second half of out
    xot = feat.reshape(BATCH, FLAT)              # 'b c 1 t -> b (c t)'
    return out2, att_out, xot


# ----------------------------------- main ------------------------------------
if __name__ == "__main__":
    key = jax.random.PRNGKey(0)
    kp, kx = jax.random.split(key)
    params = init_params(kp)
    prepped = prepare_params(params)     # one-time weight re-layout / slab packing

    x = jax.random.normal(kx, (BATCH, N_LIST[0], M_ELEC, T_IN), jnp.float32)
    ids = jnp.array([1, 7], dtype=jnp.int32)

    fwd = jax.jit(g_net_forward)
    out, att_out, xot = fwd(prepped, x, ids)
    jax.block_until_ready((out, att_out, xot))

    assert out.shape == (BATCH, 2 * MID)
    assert att_out.shape == (BATCH, MID)
    assert xot.shape == (BATCH, FLAT)
    assert bool(jnp.all(jnp.isfinite(out)))
    assert bool(jnp.all(jnp.isfinite(att_out)))
    assert bool(jnp.all(jnp.isfinite(xot)))
    print("KERNEL_OK")
</pallas_src>

<mosaic_0001>
module attributes {stable_mosaic.version = 11 : i64} {
  func.func @_gnet_kernel(%arg0: i32, %arg1: memref<272x30xf32, #tpu.memory_space<vmem>>, %arg2: memref<64x144xf32, #tpu.memory_space<vmem>>, %arg3: memref<144x272xf32, #tpu.memory_space<vmem>>, %arg4: memref<32x352xf32, #tpu.memory_space<vmem>>, %arg5: memref<64x1xf32, #tpu.memory_space<vmem>>, %arg6: memref<128x256xf32, #tpu.memory_space<vmem>>, %arg7: memref<40x32xf32, #tpu.memory_space<vmem>>, %arg8: memref<352x16xf32, #tpu.memory_space<vmem>>, %arg9: memref<64x8xf32, #tpu.memory_space<vmem>>, %arg10: memref<2x32xf32, #tpu.memory_space<vmem>>, %arg11: memref<32x30xf32, #tpu.memory_space<vmem>>) attributes {dimension_semantics = [#tpu.dimension_semantics<arbitrary>], iteration_bounds = array<i64: 1>, scalar_prefetch = 0 : i64, scratch_operands = 0 : i64, tpu.core_type = #tpu.core_type<tc>, window_params = [{pipeline_mode = #tpu.pipeline_mode<synchronous>, transform_indices = @transform_0, window_bounds = array<i64: 272, 30>}, {pipeline_mode = #tpu.pipeline_mode<synchronous>, transform_indices = @transform_1, window_bounds = array<i64: 64, 144>}, {pipeline_mode = #tpu.pipeline_mode<synchronous>, transform_indices = @transform_2, window_bounds = array<i64: 144, 272>}, {pipeline_mode = #tpu.pipeline_mode<synchronous>, transform_indices = @transform_3, window_bounds = array<i64: 32, 352>}, {pipeline_mode = #tpu.pipeline_mode<synchronous>, transform_indices = @transform_4, window_bounds = array<i64: 64, 1>}, {pipeline_mode = #tpu.pipeline_mode<synchronous>, transform_indices = @transform_5, window_bounds = array<i64: 128, 256>}, {pipeline_mode = #tpu.pipeline_mode<synchronous>, transform_indices = @transform_6, window_bounds = array<i64: 40, 32>}, {pipeline_mode = #tpu.pipeline_mode<synchronous>, transform_indices = @transform_7, window_bounds = array<i64: 352, 16>}, {pipeline_mode = #tpu.pipeline_mode<synchronous>, transform_indices = @transform_8, window_bounds = array<i64: 64, 8>}, {pipeline_mode = #tpu.pipeline_mode<synchronous>, transform_indices = @transform_9, window_bounds = array<i64: 2, 32>}, {pipeline_mode = #tpu.pipeline_mode<synchronous>, transform_indices = @transform_10, window_bounds = array<i64: 32, 30>}]} {
    %c0 = arith.constant 0 : index
    %c0_0 = arith.constant 0 : index
    %0 = vector.load %arg3[%c0, %c0_0] : memref<144x272xf32, #tpu.memory_space<vmem>>, vector<144x272xf32>
    %c0_1 = arith.constant 0 : index
    %c0_2 = arith.constant 0 : index
    %1 = vector.load %arg1[%c0_1, %c0_2] : memref<272x30xf32, #tpu.memory_space<vmem>>, vector<272x30xf32>
    %cst = arith.constant dense<0.000000e+00> : vector<144x30xf32>
    %2 = tpu.matmul %0, %1, %cst {dimension_numbers = #tpu.dot_dimension_numbers<[1], [0], [0], [1], [0, 0, 1, 1], [], []>} : vector<144x272xf32>, vector<272x30xf32>, vector<144x30xf32> -> vector<144x30xf32>
    %cst_3 = arith.constant 0.000000e+00 : f32
    %3 = vector.broadcast %cst_3 : f32 to vector<144x30xf32>
    %4 = arith.maximumf %2, %3 : vector<144x30xf32>
    %c0_4 = arith.constant 0 : index
    %c0_5 = arith.constant 0 : index
    %5 = vector.load %arg2[%c0_4, %c0_5] : memref<64x144xf32, #tpu.memory_space<vmem>>, vector<64x144xf32>
    %cst_6 = arith.constant dense<0.000000e+00> : vector<64x30xf32>
    %6 = tpu.matmul %5, %4, %cst_6 {dimension_numbers = #tpu.dot_dimension_numbers<[1], [0], [0], [1], [0, 0, 1, 1], [], []>} : vector<64x144xf32>, vector<144x30xf32>, vector<64x30xf32> -> vector<64x30xf32>
    %c0_7 = arith.constant 0 : index
    %c0_8 = arith.constant 0 : index
    %7 = vector.load %arg4[%c0_7, %c0_8] : memref<32x352xf32, #tpu.memory_space<vmem>>, vector<32x192xf32>
    %cst_9 = arith.constant 0.000000e+00 : f32
    %8 = vector.broadcast %cst_9 : f32 to vector<64x1xf32>
    %9 = vector.extract_strided_slice %6 {offsets = [0, 0], sizes = [64, 29], strides = [1, 1]} : vector<64x30xf32> to vector<64x29xf32>
    %10 = tpu.concatenate %8, %9 in 1 : vector<64x1xf32>, vector<64x29xf32> -> vector<64x30xf32>
    %11 = vector.extract_strided_slice %6 {offsets = [0, 1], sizes = [64, 29], strides = [1, 1]} : vector<64x30xf32> to vector<64x29xf32>
    %12 = tpu.concatenate %11, %8 in 1 : vector<64x29xf32>, vector<64x1xf32> -> vector<64x30xf32>
    %13 = tpu.concatenate %10, %6, %12 in 0 : vector<64x30xf32>, vector<64x30xf32>, vector<64x30xf32> -> vector<192x30xf32>
    %cst_10 = arith.constant dense<0.000000e+00> : vector<32x30xf32>
    %14 = tpu.matmul %7, %13, %cst_10 {dimension_numbers = #tpu.dot_dimension_numbers<[1], [0], [0], [1], [0, 0, 1, 1], [], []>} : vector<32x192xf32>, vector<192x30xf32>, vector<32x30xf32> -> vector<32x30xf32>
    %c0_11 = arith.constant 0 : index
    %c0_12 = arith.constant 0 : index
    %15 = vector.load %arg5[%c0_11, %c0_12] : memref<64x1xf32, #tpu.memory_space<vmem>>, vector<32x1xf32>
    %16 = vector.broadcast %15 : vector<32x1xf32> to vector<32x30xf32>
    %17 = arith.addf %14, %16 : vector<32x30xf32>
    %cst_13 = arith.constant 0.000000e+00 : f32
    %18 = vector.broadcast %cst_13 : f32 to vector<32x30xf32>
    %19 = arith.maximumf %17, %18 : vector<32x30xf32>
    %c0_14 = arith.constant 0 : index
    %c0_15 = arith.constant 0 : index
    %20 = vector.load %arg6[%c0_14, %c0_15] : memref<128x256xf32, #tpu.memory_space<vmem>>, vector<30x256xf32>
    %c0_16 = arith.constant 0 : index
    %c0_17 = arith.constant 0 : index
    %21 = vector.load %arg7[%c0_16, %c0_17] : memref<40x32xf32, #tpu.memory_space<vmem>>, vector<8x32xf32>
    %c0_18 = arith.constant 0 : index
    %c0_19 = arith.constant 0 : index
    %22 = vector.load %arg9[%c0_18, %c0_19] : memref<64x8xf32, #tpu.memory_space<vmem>>, vector<32x8xf32>
    %c16 = arith.constant 16 : index
    %c0_20 = arith.constant 0 : index
    %23 = vector.load %arg7[%c16, %c0_20] : memref<40x32xf32, #tpu.memory_space<vmem>>, vector<2x32xf32>
    %cst_21 = arith.constant dense<0.000000e+00> : vector<32x256xf32>
    %24 = tpu.matmul %19, %20, %cst_21 {dimension_numbers = #tpu.dot_dimension_numbers<[1], [0], [0], [1], [0, 0, 1, 1], [], []>} : vector<32x30xf32>, vector<30x256xf32>, vector<32x256xf32> -> vector<32x256xf32>
    %25 = vector.extract_strided_slice %24 {offsets = [0, 0], sizes = [32, 40], strides = [1, 1]} : vector<32x256xf32> to vector<32x40xf32>
    %26 = vector.extract_strided_slice %24 {offsets = [0, 128], sizes = [32, 40], strides = [1, 1]} : vector<32x256xf32> to vector<32x40xf32>
    %27 = arith.mulf %25, %25 : vector<32x40xf32>
    %28 = arith.mulf %26, %26 : vector<32x40xf32>
    %29 = arith.addf %27, %28 : vector<32x40xf32>
    %cst_22 = arith.constant dense<0.000000e+00> : vector<32xf32>
    %30 = vector.multi_reduction <add>, %29, %cst_22 [1] : vector<32x40xf32> to vector<32xf32>
    %31 = vector.shape_cast %30 : vector<32xf32> to vector<32x1xf32>
    %cst_23 = arith.constant 4.000000e+01 : f32
    %32 = vector.broadcast %cst_23 : f32 to vector<32x1xf32>
    %33 = arith.divf %31, %32 : vector<32x1xf32>
    %cst_24 = arith.constant dense<0.000000e+00> : vector<8x1xf32>
    %34 = tpu.matmul %21, %33, %cst_24 {dimension_numbers = #tpu.dot_dimension_numbers<[1], [0], [0], [1], [0, 0, 1, 1], [], []>} : vector<8x32xf32>, vector<32x1xf32>, vector<8x1xf32> -> vector<8x1xf32>
    %cst_25 = arith.constant 0.000000e+00 : f32
    %35 = vector.broadcast %cst_25 : f32 to vector<8x1xf32>
    %36 = arith.maximumf %34, %35 : vector<8x1xf32>
    %cst_26 = arith.constant dense<0.000000e+00> : vector<32x1xf32>
    %37 = tpu.matmul %22, %36, %cst_26 {dimension_numbers = #tpu.dot_dimension_numbers<[1], [0], [0], [1], [0, 0, 1, 1], [], []>} : vector<32x8xf32>, vector<8x1xf32>, vector<32x1xf32> -> vector<32x1xf32>
    %cst_27 = arith.constant 5.000000e-01 : f32
    %38 = vector.broadcast %cst_27 : f32 to vector<32x1xf32>
    %39 = arith.mulf %38, %37 : vector<32x1xf32>
    %40 = math.tanh %39 : vector<32x1xf32>
    %cst_28 = arith.constant 1.000000e+00 : f32
    %41 = vector.broadcast %cst_28 : f32 to vector<32x1xf32>
    %42 = arith.addf %41, %40 : vector<32x1xf32>
    %cst_29 = arith.constant 5.000000e-01 : f32
    %43 = vector.broadcast %cst_29 : f32 to vector<32x1xf32>
    %44 = arith.mulf %43, %42 : vector<32x1xf32>
    %cst_30 = arith.constant dense<0xFF800000> : vector<32xf32>
    %45 = vector.multi_reduction <maximumf>, %29, %cst_30 [1] : vector<32x40xf32> to vector<32xf32>
    %46 = vector.shape_cast %45 : vector<32xf32> to vector<32x1xf32>
    %47 = vector.broadcast %46 : vector<32x1xf32> to vector<32x40xf32>
    %48 = arith.subf %29, %47 : vector<32x40xf32>
    %49 = math.exp %48 : vector<32x40xf32>
    %cst_31 = arith.constant dense<0.000000e+00> : vector<32xf32>
    %50 = vector.multi_reduction <add>, %49, %cst_31 [1] : vector<32x40xf32> to vector<32xf32>
    %51 = vector.shape_cast %50 : vector<32xf32> to vector<32x1xf32>
    %52 = tpu.reciprocal %51 {approx = true} : vector<32x1xf32> -> vector<32x1xf32>
    %53 = vector.broadcast %52 : vector<32x1xf32> to vector<32x40xf32>
    %54 = arith.mulf %49, %53 : vector<32x40xf32>
    %cst_32 = arith.constant dense<0.000000e+00> : vector<2x40xf32>
    %55 = tpu.matmul %23, %54, %cst_32 {dimension_numbers = #tpu.dot_dimension_numbers<[1], [0], [0], [1], [0, 0, 1, 1], [], []>} : vector<2x32xf32>, vector<32x40xf32>, vector<2x40xf32> -> vector<2x40xf32>
    %56 = vector.broadcast %44 : vector<32x1xf32> to vector<32x30xf32>
    %57 = arith.mulf %19, %56 : vector<32x30xf32>
    %58 = arith.addf %19, %57 : vector<32x30xf32>
    %cst_33 = arith.constant 0.000000e+00 : f32
    %59 = vector.broadcast %cst_33 : f32 to vector<32x30xf32>
    %60 = arith.maximumf %58, %59 : vector<32x30xf32>
    %c0_34 = arith.constant 0 : index
    %c256 = arith.constant 256 : index
    %61 = vector.load %arg4[%c0_34, %c256] : memref<32x352xf32, #tpu.memory_space<vmem>>, vector<32x96xf32>
    %cst_35 = arith.constant 0.000000e+00 : f32
    %62 = vector.broadcast %cst_35 : f32 to vector<32x1xf32>
    %63 = vector.extract_strided_slice %60 {offsets = [0, 0], sizes = [32, 29], strides = [1, 1]} : vector<32x30xf32> to vector<32x29xf32>
    %64 = tpu.concatenate %62, %63 in 1 : vector<32x1xf32>, vector<32x29xf32> -> vector<32x30xf32>
    %65 = vector.extract_strided_slice %60 {offsets = [0, 1], sizes = [32, 29], strides = [1, 1]} : vector<32x30xf32> to vector<32x29xf32>
    %66 = tpu.concatenate %65, %62 in 1 : vector<32x29xf32>, vector<32x1xf32> -> vector<32x30xf32>
    %67 = tpu.concatenate %64, %60, %66 in 0 : vector<32x30xf32>, vector<32x30xf32>, vector<32x30xf32> -> vector<96x30xf32>
    %cst_36 = arith.constant dense<0.000000e+00> : vector<32x30xf32>
    %68 = tpu.matmul %61, %67, %cst_36 {dimension_numbers = #tpu.dot_dimension_numbers<[1], [0], [0], [1], [0, 0, 1, 1], [], []>} : vector<32x96xf32>, vector<96x30xf32>, vector<32x30xf32> -> vector<32x30xf32>
    %c32 = arith.constant 32 : index
    %c0_37 = arith.constant 0 : index
    %69 = vector.load %arg5[%c32, %c0_37] : memref<64x1xf32, #tpu.memory_space<vmem>>, vector<32x1xf32>
    %70 = vector.broadcast %69 : vector<32x1xf32> to vector<32x30xf32>
    %71 = arith.addf %68, %70 : vector<32x30xf32>
    %cst_38 = arith.constant 0.000000e+00 : f32
    %72 = vector.broadcast %cst_38 : f32 to vector<32x30xf32>
    %73 = arith.maximumf %71, %72 : vector<32x30xf32>
    %c32_39 = arith.constant 32 : index
    %c0_40 = arith.constant 0 : index
    %74 = vector.load %arg6[%c32_39, %c0_40] : memref<128x256xf32, #tpu.memory_space<vmem>>, vector<30x256xf32>
    %c8 = arith.constant 8 : index
    %c0_41 = arith.constant 0 : index
    %75 = vector.load %arg7[%c8, %c0_41] : memref<40x32xf32, #tpu.memory_space<vmem>>, vector<8x32xf32>
    %c32_42 = arith.constant 32 : index
    %c0_43 = arith.constant 0 : index
    %76 = vector.load %arg9[%c32_42, %c0_43] : memref<64x8xf32, #tpu.memory_space<vmem>>, vector<32x8xf32>
    %c24 = arith.constant 24 : index
    %c0_44 = arith.constant 0 : index
    %77 = vector.load %arg7[%c24, %c0_44] : memref<40x32xf32, #tpu.memory_space<vmem>>, vector<2x32xf32>
    %cst_45 = arith.constant dense<0.000000e+00> : vector<32x256xf32>
    %78 = tpu.matmul %73, %74, %cst_45 {dimension_numbers = #tpu.dot_dimension_numbers<[1], [0], [0], [1], [0, 0, 1, 1], [], []>} : vector<32x30xf32>, vector<30x256xf32>, vector<32x256xf32> -> vector<32x256xf32>
    %79 = vector.extract_strided_slice %78 {offsets = [0, 0], sizes = [32, 40], strides = [1, 1]} : vector<32x256xf32> to vector<32x40xf32>
    %80 = vector.extract_strided_slice %78 {offsets = [0, 128], sizes = [32, 40], strides = [1, 1]} : vector<32x256xf32> to vector<32x40xf32>
    %81 = arith.mulf %79, %79 : vector<32x40xf32>
    %82 = arith.mulf %80, %80 : vector<32x40xf32>
    %83 = arith.addf %81, %82 : vector<32x40xf32>
    %cst_46 = arith.constant dense<0.000000e+00> : vector<32xf32>
    %84 = vector.multi_reduction <add>, %83, %cst_46 [1] : vector<32x40xf32> to vector<32xf32>
    %85 = vector.shape_cast %84 : vector<32xf32> to vector<32x1xf32>
    %cst_47 = arith.constant 4.000000e+01 : f32
    %86 = vector.broadcast %cst_47 : f32 to vector<32x1xf32>
    %87 = arith.divf %85, %86 : vector<32x1xf32>
    %cst_48 = arith.constant dense<0.000000e+00> : vector<8x1xf32>
    %88 = tpu.matmul %75, %87, %cst_48 {dimension_numbers = #tpu.dot_dimension_numbers<[1], [0], [0], [1], [0, 0, 1, 1], [], []>} : vector<8x32xf32>, vector<32x1xf32>, vector<8x1xf32> -> vector<8x1xf32>
    %cst_49 = arith.constant 0.000000e+00 : f32
    %89 = vector.broadcast %cst_49 : f32 to vector<8x1xf32>
    %90 = arith.maximumf %88, %89 : vector<8x1xf32>
    %cst_50 = arith.constant dense<0.000000e+00> : vector<32x1xf32>
    %91 = tpu.matmul %76, %90, %cst_50 {dimension_numbers = #tpu.dot_dimension_numbers<[1], [0], [0], [1], [0, 0, 1, 1], [], []>} : vector<32x8xf32>, vector<8x1xf32>, vector<32x1xf32> -> vector<32x1xf32>
    %cst_51 = arith.constant 5.000000e-01 : f32
    %92 = vector.broadcast %cst_51 : f32 to vector<32x1xf32>
    %93 = arith.mulf %92, %91 : vector<32x1xf32>
    %94 = math.tanh %93 : vector<32x1xf32>
    %cst_52 = arith.constant 1.000000e+00 : f32
    %95 = vector.broadcast %cst_52 : f32 to vector<32x1xf32>
    %96 = arith.addf %95, %94 : vector<32x1xf32>
    %cst_53 = arith.constant 5.000000e-01 : f32
    %97 = vector.broadcast %cst_53 : f32 to vector<32x1xf32>
    %98 = arith.mulf %97, %96 : vector<32x1xf32>
    %cst_54 = arith.constant dense<0xFF800000> : vector<32xf32>
    %99 = vector.multi_reduction <maximumf>, %83, %cst_54 [1] : vector<32x40xf32> to vector<32xf32>
    %100 = vector.shape_cast %99 : vector<32xf32> to vector<32x1xf32>
    %101 = vector.broadcast %100 : vector<32x1xf32> to vector<32x40xf32>
    %102 = arith.subf %83, %101 : vector<32x40xf32>
    %103 = math.exp %102 : vector<32x40xf32>
    %cst_55 = arith.constant dense<0.000000e+00> : vector<32xf32>
    %104 = vector.multi_reduction <add>, %103, %cst_55 [1] : vector<32x40xf32> to vector<32xf32>
    %105 = vector.shape_cast %104 : vector<32xf32> to vector<32x1xf32>
    %106 = tpu.reciprocal %105 {approx = true} : vector<32x1xf32> -> vector<32x1xf32>
    %107 = vector.broadcast %106 : vector<32x1xf32> to vector<32x40xf32>
    %108 = arith.mulf %103, %107 : vector<32x40xf32>
    %cst_56 = arith.constant dense<0.000000e+00> : vector<2x40xf32>
    %109 = tpu.matmul %77, %108, %cst_56 {dimension_numbers = #tpu.dot_dimension_numbers<[1], [0], [0], [1], [0, 0, 1, 1], [], []>} : vector<2x32xf32>, vector<32x40xf32>, vector<2x40xf32> -> vector<2x40xf32>
    %110 = vector.broadcast %98 : vector<32x1xf32> to vector<32x30xf32>
    %111 = arith.mulf %73, %110 : vector<32x30xf32>
    %112 = arith.addf %111, %60 : vector<32x30xf32>
    %cst_57 = arith.constant 0.000000e+00 : f32
    %113 = vector.broadcast %cst_57 : f32 to vector<32x30xf32>
    %114 = arith.maximumf %112, %113 : vector<32x30xf32>
    %c0_58 = arith.constant 0 : index
    %c0_59 = arith.constant 0 : index
    %115 = vector.load %arg11[%c0_58, %c0_59] : memref<32x30xf32, #tpu.memory_space<vmem>>, vector<32x30xf32>
    tpu.vector_store %arg11[%c0_58, %c0_59], %114 {strides = array<i32>} : memref<32x30xf32, #tpu.memory_space<vmem>>, vector<32x30xf32>,
    %c64 = arith.constant 64 : index
    %c0_60 = arith.constant 0 : index
    %116 = vector.load %arg6[%c64, %c0_60] : memref<128x256xf32, #tpu.memory_space<vmem>>, vector<30x256xf32>
    %cst_61 = arith.constant dense<0.000000e+00> : vector<32x256xf32>
    %117 = tpu.matmul %114, %116, %cst_61 {dimension_numbers = #tpu.dot_dimension_numbers<[1], [0], [0], [1], [0, 0, 1, 1], [], []>} : vector<32x30xf32>, vector<30x256xf32>, vector<32x256xf32> -> vector<32x256xf32>
    %c96 = arith.constant 96 : index
    %c0_62 = arith.constant 0 : index
    %118 = vector.load %arg6[%c96, %c0_62] : memref<128x256xf32, #tpu.memory_space<vmem>>, vector<32x256xf32>
    %119 = arith.mulf %117, %118 : vector<32x256xf32>
    %c0_63 = arith.constant 0 : index
    %c0_64 = arith.constant 0 : index
    %120 = vector.load %arg8[%c0_63, %c0_64] : memref<352x16xf32, #tpu.memory_space<vmem>>, vector<256x16xf32>
    %cst_65 = arith.constant dense<0.000000e+00> : vector<32x16xf32>
    %121 = tpu.matmul %119, %120, %cst_65 {dimension_numbers = #tpu.dot_dimension_numbers<[1], [0], [0], [1], [0, 0, 1, 1], [], []>} : vector<32x256xf32>, vector<256x16xf32>, vector<32x16xf32> -> vector<32x16xf32>
    %c32_66 = arith.constant 32 : index
    %c0_67 = arith.constant 0 : index
    %122 = vector.load %arg7[%c32_66, %c0_67] : memref<40x32xf32, #tpu.memory_space<vmem>>, vector<2x32xf32>
    %cst_68 = arith.constant dense<0.000000e+00> : vector<2x16xf32>
    %123 = tpu.matmul %122, %121, %cst_68 {dimension_numbers = #tpu.dot_dimension_numbers<[1], [0], [0], [1], [0, 0, 1, 1], [], []>} : vector<2x32xf32>, vector<32x16xf32>, vector<2x16xf32> -> vector<2x16xf32>
    %c336 = arith.constant 336 : index
    %c0_69 = arith.constant 0 : index
    %124 = vector.load %arg8[%c336, %c0_69] : memref<352x16xf32, #tpu.memory_space<vmem>>, vector<1x16xf32>
    %125 = vector.broadcast %124 : vector<1x16xf32> to vector<2x16xf32>
    %126 = arith.addf %123, %125 : vector<2x16xf32>
    %c344 = arith.constant 344 : index
    %c0_70 = arith.constant 0 : index
    %127 = vector.load %arg8[%c344, %c0_70] : memref<352x16xf32, #tpu.memory_space<vmem>>, vector<1x16xf32>
    %cst_71 = arith.constant 0.000000e+00 : f32
    %128 = vector.broadcast %cst_71 : f32 to vector<2x40xf32>
    %129 = arith.maximumf %55, %128 : vector<2x40xf32>
    %c256_72 = arith.constant 256 : index
    %c0_73 = arith.constant 0 : index
    %130 = vector.load %arg8[%c256_72, %c0_73] : memref<352x16xf32, #tpu.memory_space<vmem>>, vector<40x16xf32>
    %cst_74 = arith.constant dense<0.000000e+00> : vector<2x16xf32>
    %131 = tpu.matmul %129, %130, %cst_74 {dimension_numbers = #tpu.dot_dimension_numbers<[1], [0], [0], [1], [0, 0, 1, 1], [], []>} : vector<2x40xf32>, vector<40x16xf32>, vector<2x16xf32> -> vector<2x16xf32>
    %132 = vector.broadcast %127 : vector<1x16xf32> to vector<2x16xf32>
    %133 = arith.addf %132, %131 : vector<2x16xf32>
    %cst_75 = arith.constant 0.000000e+00 : f32
    %134 = vector.broadcast %cst_75 : f32 to vector<2x40xf32>
    %135 = arith.maximumf %109, %134 : vector<2x40xf32>
    %c296 = arith.constant 296 : index
    %c0_76 = arith.constant 0 : index
    %136 = vector.load %arg8[%c296, %c0_76] : memref<352x16xf32, #tpu.memory_space<vmem>>, vector<40x16xf32>
    %cst_77 = arith.constant dense<0.000000e+00> : vector<2x16xf32>
    %137 = tpu.matmul %135, %136, %cst_77 {dimension_numbers = #tpu.dot_dimension_numbers<[1], [0], [0], [1], [0, 0, 1, 1], [], []>} : vector<2x40xf32>, vector<40x16xf32>, vector<2x16xf32> -> vector<2x16xf32>
    %138 = arith.addf %133, %137 : vector<2x16xf32>
    %c0_78 = arith.constant 0 : index
    %c0_79 = arith.constant 0 : index
    %139 = vector.load %arg10[%c0_78, %c0_79] : memref<2x32xf32, #tpu.memory_space<vmem>>, vector<2x16xf32>
    tpu.vector_store %arg10[%c0_78, %c0_79], %126 {strides = array<i32>} : memref<2x32xf32, #tpu.memory_space<vmem>>, vector<2x16xf32>,
    %c0_80 = arith.constant 0 : index
    %c16_81 = arith.constant 16 : index
    %140 = vector.load %arg10[%c0_80, %c16_81] : memref<2x32xf32, #tpu.memory_space<vmem>>, vector<2x16xf32>
    tpu.vector_store %arg10[%c0_80, %c16_81], %138 {strides = array<i32>} : memref<2x32xf32, #tpu.memory_space<vmem>>, vector<2x16xf32>,
    return
  }
  func.func @transform_0(%arg0: i32) -> (i32, i32) {
    %c0_i32 = arith.constant 0 : i32
    %c0_i32_0 = arith.constant 0 : i32
    %c0_i32_1 = arith.constant 0 : i32
    return %c0_i32, %c0_i32_0 : i32, i32
  }
  func.func @transform_1(%arg0: i32) -> (i32, i32) {
    %c0_i32 = arith.constant 0 : i32
    %c0_i32_0 = arith.constant 0 : i32
    %c0_i32_1 = arith.constant 0 : i32
    return %c0_i32, %c0_i32_0 : i32, i32
  }
  func.func @transform_2(%arg0: i32) -> (i32, i32) {
    %c0_i32 = arith.constant 0 : i32
    %c0_i32_0 = arith.constant 0 : i32
    %c0_i32_1 = arith.constant 0 : i32
    return %c0_i32, %c0_i32_0 : i32, i32
  }
  func.func @transform_3(%arg0: i32) -> (i32, i32) {
    %c0_i32 = arith.constant 0 : i32
    %c0_i32_0 = arith.constant 0 : i32
    %c0_i32_1 = arith.constant 0 : i32
    return %c0_i32, %c0_i32_0 : i32, i32
  }
  func.func @transform_4(%arg0: i32) -> (i32, i32) {
    %c0_i32 = arith.constant 0 : i32
    %c0_i32_0 = arith.constant 0 : i32
    %c0_i32_1 = arith.constant 0 : i32
    return %c0_i32, %c0_i32_0 : i32, i32
  }
  func.func @transform_5(%arg0: i32) -> (i32, i32) {
    %c0_i32 = arith.constant 0 : i32
    %c0_i32_0 = arith.constant 0 : i32
    %c0_i32_1 = arith.constant 0 : i32
    return %c0_i32, %c0_i32_0 : i32, i32
  }
  func.func @transform_6(%arg0: i32) -> (i32, i32) {
    %c0_i32 = arith.constant 0 : i32
    %c0_i32_0 = arith.constant 0 : i32
    %c0_i32_1 = arith.constant 0 : i32
    return %c0_i32, %c0_i32_0 : i32, i32
  }
  func.func @transform_7(%arg0: i32) -> (i32, i32) {
    %c0_i32 = arith.constant 0 : i32
    %c0_i32_0 = arith.constant 0 : i32
    %c0_i32_1 = arith.constant 0 : i32
    return %c0_i32, %c0_i32_0 : i32, i32
  }
  func.func @transform_8(%arg0: i32) -> (i32, i32) {
    %c0_i32 = arith.constant 0 : i32
    %c0_i32_0 = arith.constant 0 : i32
    %c0_i32_1 = arith.constant 0 : i32
    return %c0_i32, %c0_i32_0 : i32, i32
  }
  func.func @transform_9(%arg0: i32) -> (i32, i32) {
    %c0_i32 = arith.constant 0 : i32
    %c0_i32_0 = arith.constant 0 : i32
    %c0_i32_1 = arith.constant 0 : i32
    return %c0_i32, %c0_i32_0 : i32, i32
  }
  func.func @transform_10(%arg0: i32) -> (i32, i32) {
    %c0_i32 = arith.constant 0 : i32
    %c0_i32_0 = arith.constant 0 : i32
    %c0_i32_1 = arith.constant 0 : i32
    return %c0_i32, %c0_i32_0 : i32, i32
  }
}

</mosaic_0001>

<llo_original>
// kernel: g_net_forward.1
$region0: #{g_net_forward.1}
  #allocation0 [shape = 'u32[]', space=smem, size = 0x4, offset = 0x4, fixed_abs, tag = 'smem constant byte address 0x4 - core index']
  #allocation1 [shape = 'u32[144,128]{1,0:T(1,128)}', space=vmem, size = 0x12000, scoped, tag = 'internal scratch']
  %s0 = inlined_call_operand.vmem [shape: f32[272,30], index: 0, kind: input, shape index: {}]
  %s1 = inlined_call_operand.vmem [shape: f32[64,144], index: 1, kind: input, shape index: {}]
  %s2 = inlined_call_operand.vmem [shape: f32[144,272], index: 2, kind: input, shape index: {}]
  %s3 = inlined_call_operand.vmem [shape: f32[32,352], index: 3, kind: input, shape index: {}]
  %s4 = inlined_call_operand.vmem [shape: f32[64,1], index: 4, kind: input, shape index: {}]
  %s5 = inlined_call_operand.vmem [shape: f32[128,256], index: 5, kind: input, shape index: {}]
  %s6 = inlined_call_operand.vmem [shape: f32[40,32], index: 6, kind: input, shape index: {}]
  %s7 = inlined_call_operand.vmem [shape: f32[352,16], index: 7, kind: input, shape index: {}]
  %s8 = inlined_call_operand.vmem [shape: f32[64,8], index: 8, kind: input, shape index: {}]
  %s9 = inlined_call_operand.vmem [shape: f32[2,32], index: 9, kind: output, shape index: {0}]
  %s10 = inlined_call_operand.vmem [shape: f32[32,30], index: 10, kind: output, shape index: {1}]
  %11 = xla_tuple %s9, %s10
  %s12 = sld [smem:[#allocation0]]
  $region54: #{g_net_forward.1} parent=0
    _
  %s14 = ssub.s32 1, %s12
  %s15 = scalar_select 0, %s14, %s12
  // Predicated region
  $region2: #{g_net_forward.1} parent=0 // pred_check
    _
  $region3: #{g_net_forward.1} parent=0 // pred_check_branch
    %17 = sbr.rel (0) target = $region5
  $region4: #{g_net_forward.1} parent=0 // pred_region
    _
  $region5: #{g_net_forward.1} parent=0 // pred_fallthru
    _
  // Predicated region
  $region6: #{g_net_forward.1} parent=0 // pred_check
    _
  $region7: #{g_net_forward.1} parent=0 // pred_check_branch
    %19 = sbr.rel (0) target = $region9
  $region8: #{g_net_forward.1} parent=0 // pred_region
    _
  $region9: #{g_net_forward.1} parent=0 // pred_fallthru
    _
  // Predicated region
  $region10: #{g_net_forward.1} parent=0 // pred_check
    _
  $region11: #{g_net_forward.1} parent=0 // pred_check_branch
    %21 = sbr.rel (0) target = $region13
  $region12: #{g_net_forward.1} parent=0 // pred_region
    _
  $region13: #{g_net_forward.1} parent=0 // pred_fallthru
    _
  // Predicated region
  $region14: #{g_net_forward.1} parent=0 // pred_check
    _
  $region15: #{g_net_forward.1} parent=0 // pred_check_branch
    %23 = sbr.rel (0) target = $region17
  $region16: #{g_net_forward.1} parent=0 // pred_region
    _
  $region17: #{g_net_forward.1} parent=0 // pred_fallthru
    _
  // Predicated region
  $region18: #{g_net_forward.1} parent=0 // pred_check
    _
  $region19: #{g_net_forward.1} parent=0 // pred_check_branch
    %25 = sbr.rel (0) target = $region21
  $region20: #{g_net_forward.1} parent=0 // pred_region
    _
  $region21: #{g_net_forward.1} parent=0 // pred_fallthru
    _
  // Predicated region
  $region22: #{g_net_forward.1} parent=0 // pred_check
    _
  $region23: #{g_net_forward.1} parent=0 // pred_check_branch
    %27 = sbr.rel (0) target = $region25
  $region24: #{g_net_forward.1} parent=0 // pred_region
    _
  $region25: #{g_net_forward.1} parent=0 // pred_fallthru
    _
  // Predicated region
  $region26: #{g_net_forward.1} parent=0 // pred_check
    _
  $region27: #{g_net_forward.1} parent=0 // pred_check_branch
    %29 = sbr.rel (0) target = $region29
  $region28: #{g_net_forward.1} parent=0 // pred_region
    _
  $region29: #{g_net_forward.1} parent=0 // pred_fallthru
    _
  // Predicated region
  $region30: #{g_net_forward.1} parent=0 // pred_check
    _
  $region31: #{g_net_forward.1} parent=0 // pred_check_branch
    %31 = sbr.rel (0) target = $region33
  $region32: #{g_net_forward.1} parent=0 // pred_region
    _
  $region33: #{g_net_forward.1} parent=0 // pred_fallthru
    _
  // Predicated region
  $region34: #{g_net_forward.1} parent=0 // pred_check
    _
  $region35: #{g_net_forward.1} parent=0 // pred_check_branch
    %33 = sbr.rel (0) target = $region37
  $region36: #{g_net_forward.1} parent=0 // pred_region
    _
  $region37: #{g_net_forward.1} parent=0 // pred_fallthru
    _
  %v34 = vld [vmem:[%s2] sm:$0xff]
  %v35 = vld [vmem:[%s2 + $0x8] sm:$0xff]
  %v36 = vld [vmem:[%s2 + $0x10] sm:$0xff]
  %v37 = vld [vmem:[%s2 + $0x18] sm:$0xff]
  %v38 = vld [vmem:[%s2 + $0x20] sm:$0xff]
  %v39 = vld [vmem:[%s2 + $0x28] sm:$0xff]
  %v40 = vld [vmem:[%s2 + $0x30] sm:$0xff]
  %v41 = vld [vmem:[%s2 + $0x38] sm:$0xff]
  %v42 = vld [vmem:[%s2 + $0x40] sm:$0xff]
  %v43 = vld [vmem:[%s2 + $0x48] sm:$0xff]
  %v44 = vld [vmem:[%s2 + $0x50] sm:$0xff]
  %v45 = vld [vmem:[%s2 + $0x58] sm:$0xff]
  %v46 = vld [vmem:[%s2 + $0x60] sm:$0xff]
  %v47 = vld [vmem:[%s2 + $0x68] sm:$0xff]
  %v48 = vld [vmem:[%s2 + $0x70] sm:$0xff]
  %v49 = vld [vmem:[%s2 + $0x78] sm:$0xff]
  %v50 = vld [vmem:[%s2 + $0x80] sm:$0xff]
  %v51 = vld [vmem:[%s2 + $0x88] sm:$0xff]
  %v52 = vld [vmem:[%s2 + $0x90] sm:$0xff]
  %v53 = vld [vmem:[%s2 + $0x98] sm:$0xff]
  %v54 = vld [vmem:[%s2 + $0xa0] sm:$0xff]
  %v55 = vld [vmem:[%s2 + $0xa8] sm:$0xff]
  %v56 = vld [vmem:[%s2 + $0xb0] sm:$0xff]
  %v57 = vld [vmem:[%s2 + $0xb8] sm:$0xff]
  %v58 = vld [vmem:[%s2 + $0xc0] sm:$0xff]
  %v59 = vld [vmem:[%s2 + $0xc8] sm:$0xff]
  %v60 = vld [vmem:[%s2 + $0xd0] sm:$0xff]
  %v61 = vld [vmem:[%s2 + $0xd8] sm:$0xff]
  %v62 = vld [vmem:[%s2 + $0xe0] sm:$0xff]
  %v63 = vld [vmem:[%s2 + $0xe8] sm:$0xff]
  %v64 = vld [vmem:[%s2 + $0xf0] sm:$0xff]
  %v65 = vld [vmem:[%s2 + $0xf8] sm:$0xff]
  %v66 = vld [vmem:[%s2 + $0x100] sm:$0xff]
  %v67 = vld [vmem:[%s2 + $0x108] sm:$0xff]
  %v68 = vld [vmem:[%s2 + $0x110] sm:$0xff]
  %v69 = vld [vmem:[%s2 + $0x118] sm:$0xff]
  %v70 = vld [vmem:[%s2 + $0x120] sm:$0xff]
  %v71 = vld [vmem:[%s2 + $0x128] sm:$0xff]
  %v72 = vld [vmem:[%s2 + $0x130] sm:$0xff]
  %v73 = vld [vmem:[%s2 + $0x138] sm:$0xff]
  %v74 = vld [vmem:[%s2 + $0x140] sm:$0xff]
  %v75 = vld [vmem:[%s2 + $0x148] sm:$0xff]
  %v76 = vld [vmem:[%s2 + $0x150] sm:$0xff]
  %v77 = vld [vmem:[%s2 + $0x158] sm:$0xff]
  %v78 = vld [vmem:[%s2 + $0x160] sm:$0xff]
  %v79 = vld [vmem:[%s2 + $0x168] sm:$0xff]
  %v80 = vld [vmem:[%s2 + $0x170] sm:$0xff]
  %v81 = vld [vmem:[%s2 + $0x178] sm:$0xff]
  %v82 = vld [vmem:[%s2 + $0x180] sm:$0xff]
  %v83 = vld [vmem:[%s2 + $0x188] sm:$0xff]
  %v84 = vld [vmem:[%s2 + $0x190] sm:$0xff]
  %v85 = vld [vmem:[%s2 + $0x198] sm:$0xff]
  %v86 = vld [vmem:[%s2 + $0x1a0] sm:$0xff]
  %v87 = vld [vmem:[%s2 + $0x1a8] sm:$0xff]
  %v88 = vld [vmem:[%s0] sm:$0xff]
  %v89 = vld [vmem:[%s0 + $0x8] sm:$0xff]
  %v90 = vld [vmem:[%s0 + $0x10] sm:$0xff]
  %v91 = vld [vmem:[%s0 + $0x18] sm:$0xff]
  %v92 = vld [vmem:[%s0 + $0x20] sm:$0xff]
  %v93 = vld [vmem:[%s0 + $0x28] sm:$0xff]
  %v94 = vld [vmem:[%s0 + $0x30] sm:$0xff]
  %v95 = vld [vmem:[%s0 + $0x38] sm:$0xff]
  %v96 = vld [vmem:[%s0 + $0x40] sm:$0xff]
  %v97 = vld [vmem:[%s0 + $0x48] sm:$0xff]
  %v98 = vld [vmem:[%s0 + $0x50] sm:$0xff]
  %v99 = vld [vmem:[%s0 + $0x58] sm:$0xff]
  %v100 = vld [vmem:[%s0 + $0x60] sm:$0xff]
  %v101 = vld [vmem:[%s0 + $0x68] sm:$0xff]
  %v102 = vld [vmem:[%s0 + $0x70] sm:$0xff]
  %v103 = vld [vmem:[%s0 + $0x78] sm:$0xff]
  %v104 = vld [vmem:[%s0 + $0x80] sm:$0xff]
  %v105 = vld [vmem:[%s0 + $0x88] sm:$0xff]
  %v106 = vld [vmem:[%s0 + $0x90] sm:$0xff]
  %v107 = vld [vmem:[%s0 + $0x98] sm:$0xff]
  %v108 = vld [vmem:[%s0 + $0xa0] sm:$0xff]
  %v109 = vld [vmem:[%s0 + $0xa8] sm:$0xff]
  %v110 = vld [vmem:[%s0 + $0xb0] sm:$0xff]
  %v111 = vld [vmem:[%s0 + $0xb8] sm:$0xff]
  %v112 = vld [vmem:[%s0 + $0xc0] sm:$0xff]
  %v113 = vld [vmem:[%s0 + $0xc8] sm:$0xff]
  %v114 = vld [vmem:[%s0 + $0xd0] sm:$0xff]
  %v115 = vld [vmem:[%s0 + $0xd8] sm:$0xff]
  %v116 = vld [vmem:[%s0 + $0xe0] sm:$0xff]
  %v117 = vld [vmem:[%s0 + $0xe8] sm:$0xff]
  %v118 = vld [vmem:[%s0 + $0xf0] sm:$0xff]
  %v119 = vld [vmem:[%s0 + $0xf8] sm:$0xff]
  %v120 = vld [vmem:[%s0 + $0x100] sm:$0xff]
  %v121 = vld [vmem:[%s0 + $0x108] sm:$0xff]
  %vm122 = vcmask 130048
  %v124 = vsel %vm122, %v36, 0
  %v127 = vsel %vm122, %v39, 0
  %v130 = vsel %vm122, %v42, 0
  %v133 = vsel %vm122, %v45, 0
  %v136 = vsel %vm122, %v48, 0
  %v139 = vsel %vm122, %v51, 0
  %v142 = vsel %vm122, %v54, 0
  %v145 = vsel %vm122, %v57, 0
  %v148 = vsel %vm122, %v60, 0
  %v151 = vsel %vm122, %v63, 0
  %v154 = vsel %vm122, %v66, 0
  %v157 = vsel %vm122, %v69, 0
  %v160 = vsel %vm122, %v72, 0
  %v163 = vsel %vm122, %v75, 0
  %v166 = vsel %vm122, %v78, 0
  %v169 = vsel %vm122, %v81, 0
  %v172 = vsel %vm122, %v84, 0
  %v175 = vsel %vm122, %v87, 0
  %177 = vmatprep.subr.mxu0 0.0
  %178 = vmatpush1.msra.mxu0 %v88
  %179 = vmatprep.subr.mxu0 0.0
  %180 = vmatpush1.msra.mxu0 %v89
  %181 = vmatprep.subr.mxu0 0.0
  %182 = vmatpush1.msra.mxu0 %v90
  %183 = vmatprep.subr.mxu0 0.0
  %184 = vmatpush1.msra.mxu0 %v91
  %185 = vmatprep.subr.mxu0 0.0
  %186 = vmatpush1.msra.mxu0 %v92
  %187 = vmatprep.subr.mxu0 0.0
  %188 = vmatpush1.msra.mxu0 %v93
  %189 = vmatprep.subr.mxu0 0.0
  %190 = vmatpush1.msra.mxu0 %v94
  %191 = vmatprep.subr.mxu0 0.0
  %192 = vmatpush1.msra.mxu0 %v95
  %193 = vmatprep.subr.mxu0 0.0
  %194 = vmatpush1.msra.mxu0 %v96
  %195 = vmatprep.subr.mxu0 0.0
  %196 = vmatpush1.msra.mxu0 %v97
  %197 = vmatprep.subr.mxu0 0.0
  %198 = vmatpush1.msra.mxu0 %v98
  %199 = vmatprep.subr.mxu0 0.0
  %200 = vmatpush1.msra.mxu0 %v99
  %201 = vmatprep.subr.mxu0 0.0
  %202 = vmatpush1.msra.mxu0 %v100
  %203 = vmatprep.subr.mxu0 0.0
  %204 = vmatpush1.msra.mxu0 %v101
  %205 = vmatprep.subr.mxu0 0.0
  %206 = vmatpush1.msra.mxu0 %v102
  %207 = vmatprep.subr.mxu0 0.0
  %208 = vmatpush1.msra.mxu0 %v103
  %209 = vmatprep.subr.mxu0 0.0
  %210 = vmatpush1.msra.mxu0 %v104
  %211 = vmatprep.subr.mxu0 0.0
  %212 = vmatpush1.msra.mxu0 %v105
  %213 = vmatprep.subr.mxu0 0.0
  %214 = vmatpush1.msra.mxu0 %v106
  %215 = vmatprep.subr.mxu0 0.0
  %216 = vmatpush1.msra.mxu0 %v107
  %217 = vmatprep.subr.mxu0 0.0
  %218 = vmatpush1.msra.mxu0 %v108
  %219 = vmatprep.subr.mxu0 0.0
  %220 = vmatpush1.msra.mxu0 %v109
  %221 = vmatprep.subr.mxu0 0.0
  %222 = vmatpush1.msra.mxu0 %v110
  %223 = vmatprep.subr.mxu0 0.0
  %224 = vmatpush1.msra.mxu0 %v111
  %225 = vmatprep.subr.mxu0 0.0
  %226 = vmatpush1.msra.mxu0 %v112
  %227 = vmatprep.subr.mxu0 0.0
  %228 = vmatpush1.msra.mxu0 %v113
  %229 = vmatprep.subr.mxu0 0.0
  %230 = vmatpush1.msra.mxu0 %v114
  %231 = vmatprep.subr.mxu0 0.0
  %232 = vmatpush1.msra.mxu0 %v115
  %233 = vmatprep.subr.mxu0 0.0
  %234 = vmatpush1.msra.mxu0 %v116
  %235 = vmatprep.subr.mxu0 0.0
  %236 = vmatpush1.msra.mxu0 %v117
  %237 = vmatprep.subr.mxu0 0.0
  %238 = vmatpush1.msra.mxu0 %v118
  %239 = vmatprep.subr.mxu0 0.0
  %240 = vmatpush1.msra.mxu0 %v119
  %241 = vmatprep.mubr.f32.mxu0 %v35
  %242 = vmatmul.mubr.f32.gmra.mrb[0].mxu0 %v34
  %v243 = vpop.f32.mrb[0].mxu0
  %v244 = vadd.f32 0.0, %v243
  %v245 = vpop.f32.mrb[0].mxu0
  %246 = vmatprep.mubr.f32.mxu0 %v38
  %247 = vmatmul.mubr.f32.gmra.mrb[0].mxu0 %v37
  %v248 = vpop.f32.mrb[0].mxu0
  %v249 = vadd.f32 0.0, %v248
  %v250 = vpop.f32.mrb[0].mxu0
  %251 = vmatprep.mubr.f32.mxu0 %v41
  %252 = vmatmul.mubr.f32.gmra.mrb[0].mxu0 %v40
  %v253 = vpop.f32.mrb[0].mxu0
  %v254 = vadd.f32 0.0, %v253
  %v255 = vpop.f32.mrb[0].mxu0
  %256 = vmatprep.mubr.f32.mxu0 %v44
  %257 = vmatmul.mubr.f32.gmra.mrb[0].mxu0 %v43
  %v258 = vpop.f32.mrb[0].mxu0
  %v259 = vadd.f32 0.0, %v258
  %v260 = vpop.f32.mrb[0].mxu0
  %261 = vmatprep.mubr.f32.mxu0 %v47
  %262 = vmatmul.mubr.f32.gmra.mrb[0].mxu0 %v46
  %v263 = vpop.f32.mrb[0].mxu0
  %v264 = vadd.f32 0.0, %v263
  %v265 = vpop.f32.mrb[0].mxu0
  %266 = vmatprep.mubr.f32.mxu0 %v50
  %267 = vmatmul.mubr.f32.gmra.mrb[0].mxu0 %v49
  %v268 = vpop.f32.mrb[0].mxu0
  %v269 = vadd.f32 0.0, %v268
  %v270 = vpop.f32.mrb[0].mxu0
  %271 = vmatprep.mubr.f32.mxu0 %v53
  %272 = vmatmul.mubr.f32.gmra.mrb[0].mxu0 %v52
  %v273 = vpop.f32.mrb[0].mxu0
  %v274 = vadd.f32 0.0, %v273
  %v275 = vpop.f32.mrb[0].mxu0
  %276 = vmatprep.mubr.f32.mxu0 %v56
  %277 = vmatmul.mubr.f32.gmra.mrb[0].mxu0 %v55
  %v278 = vpop.f32.mrb[0].mxu0
  %v279 = vadd.f32 0.0, %v278
  %v280 = vpop.f32.mrb[0].mxu0
  %281 = vmatprep.mubr.f32.mxu0 %v59
  %282 = vmatmul.mubr.f32.gmra.mrb[0].mxu0 %v58
  %v283 = vpop.f32.mrb[0].mxu0
  %v284 = vadd.f32 0.0, %v283
  %v285 = vpop.f32.mrb[0].mxu0
  %286 = vmatprep.mubr.f32.mxu0 %v62
  %287 = vmatmul.mubr.f32.gmra.mrb[0].mxu0 %v61
  %v288 = vpop.f32.mrb[0].mxu0
  %v289 = vadd.f32 0.0, %v288
  %v290 = vpop.f32.mrb[0].mxu0
  %291 = vmatprep.mubr.f32.mxu0 %v65
  %292 = vmatmul.mubr.f32.gmra.mrb[0].mxu0 %v64
  %v293 = vpop.f32.mrb[0].mxu0
  %v294 = vadd.f32 0.0, %v293
  %v295 = vpop.f32.mrb[0].mxu0
  %296 = vmatprep.mubr.f32.mxu0 %v68
  %297 = vmatmul.mubr.f32.gmra.mrb[0].mxu0 %v67
  %v298 = vpop.f32.mrb[0].mxu0
  %v299 = vadd.f32 0.0, %v298
  %v300 = vpop.f32.mrb[0].mxu0
  %301 = vmatprep.mubr.f32.mxu0 %v71
  %302 = vmatmul.mubr.f32.gmra.mrb[0].mxu0 %v70
  %v303 = vpop.f32.mrb[0].mxu0
  %v304 = vadd.f32 0.0, %v303
  %v305 = vpop.f32.mrb[0].mxu0
  %306 = vmatprep.mubr.f32.mxu0 %v74
  %307 = vmatmul.mubr.f32.gmra.mrb[0].mxu0 %v73
  %v308 = vpop.f32.mrb[0].mxu0
  %v309 = vadd.f32 0.0, %v308
  %v310 = vpop.f32.mrb[0].mxu0
  %311 = vmatprep.mubr.f32.mxu0 %v77
  %312 = vmatmul.mubr.f32.gmra.mrb[0].mxu0 %v76
  %v313 = vpop.f32.mrb[0].mxu0
  %v314 = vadd.f32 0.0, %v313
  %v315 = vpop.f32.mrb[0].mxu0
  %316 = vmatprep.mubr.f32.mxu0 %v80
  %317 = vmatmul.mubr.f32.gmra.mrb[0].mxu0 %v79
  %v318 = vpop.f32.mrb[0].mxu0
  %v319 = vadd.f32 0.0, %v318
  %v320 = vpop.f32.mrb[0].mxu0
  %321 = vmatprep.mubr.f32.mxu0 %v83
  %322 = vmatmul.mubr.f32.gmra.mrb[0].mxu0 %v82
  %v323 = vpop.f32.mrb[0].mxu0
  %v324 = vadd.f32 0.0, %v323
  %v325 = vpop.f32.mrb[0].mxu0
  %326 = vmatprep.mubr.f32.mxu0 %v86
  %327 = vmatmul.mubr.f32.gmra.mrb[0].mxu0 %v85
  %v328 = vpop.f32.mrb[0].mxu0
  %v329 = vadd.f32 0.0, %v328
  %v330 = vpop.f32.mrb[0].mxu0
  %331 = vdwg.mxu0
  %332 = vmatprep.subr.mxu0 0.0
  %333 = vmatpush1.msra.mxu0 %v120
  %334 = vmatprep.subr.mxu0 0.0
  %335 = vmatpush1.msra.mxu0 %v121
  %336 = vmatprep.subr.mxu0 0.0
  %337 = vmatpush1.msra.mxu0 0.0
  %338 = vmatprep.subr.mxu0 0.0
  %339 = vmatpush1.msra.mxu0 0.0
  %340 = vmatprep.subr.mxu0 0.0
  %341 = vmatpush1.msra.mxu0 0.0
  %342 = vmatprep.subr.mxu0 0.0
  %343 = vmatpush1.msra.mxu0 0.0
  %344 = vmatprep.subr.mxu0 0.0
  %345 = vmatpush1.msra.mxu0 0.0
  %346 = vmatprep.subr.mxu0 0.0
  %347 = vmatpush1.msra.mxu0 0.0
  %348 = vmatprep.subr.mxu0 0.0
  %349 = vmatpush1.msra.mxu0 0.0
  %350 = vmatprep.subr.mxu0 0.0
  %351 = vmatpush1.msra.mxu0 0.0
  %352 = vmatprep.subr.mxu0 0.0
  %353 = vmatpush1.msra.mxu0 0.0
  %354 = vmatprep.subr.mxu0 0.0
  %355 = vmatpush1.msra.mxu0 0.0
  %356 = vmatprep.subr.mxu0 0.0
  %357 = vmatpush1.msra.mxu0 0.0
  %358 = vmatprep.subr.mxu0 0.0
  %359 = vmatpush1.msra.mxu0 0.0
  %360 = vmatprep.subr.mxu0 0.0
  %361 = vmatpush1.msra.mxu0 0.0
  %362 = vmatprep.subr.mxu0 0.0
  %363 = vmatpush1.msra.mxu0 0.0
  %364 = vmatprep.subr.mxu0 0.0
  %365 = vmatpush1.msra.mxu0 0.0
  %366 = vmatprep.subr.mxu0 0.0
  %367 = vmatpush1.msra.mxu0 0.0
  %368 = vmatprep.subr.mxu0 0.0
  %369 = vmatpush1.msra.mxu0 0.0
  %370 = vmatprep.subr.mxu0 0.0
  %371 = vmatpush1.msra.mxu0 0.0
  %372 = vmatprep.subr.mxu0 0.0
  %373 = vmatpush1.msra.mxu0 0.0
  %374 = vmatprep.subr.mxu0 0.0
  %375 = vmatpush1.msra.mxu0 0.0
  %376 = vmatprep.subr.mxu0 0.0
  %377 = vmatpush1.msra.mxu0 0.0
  %378 = vmatprep.subr.mxu0 0.0
  %379 = vmatpush1.msra.mxu0 0.0
  %380 = vmatprep.subr.mxu0 0.0
  %381 = vmatpush1.msra.mxu0 0.0
  %382 = vmatprep.subr.mxu0 0.0
  %383 = vmatpush1.msra.mxu0 0.0
  %384 = vmatprep.subr.mxu0 0.0
  %385 = vmatpush1.msra.mxu0 0.0
  %386 = vmatprep.subr.mxu0 0.0
  %387 = vmatpush1.msra.mxu0 0.0
  %388 = vmatprep.subr.mxu0 0.0
  %389 = vmatpush1.msra.mxu0 0.0
  %390 = vmatprep.subr.mxu0 0.0
  %391 = vmatpush1.msra.mxu0 0.0
  %392 = vmatprep.subr.mxu0 0.0
  %393 = vmatpush1.msra.mxu0 0.0
  %394 = vmatprep.subr.mxu0 0.0
  %395 = vmatpush1.msra.mxu0 0.0
  %396 = vmatprep.mubr.f32.mxu0 0.0
  %397 = vmatmul.mubr.f32.gmra.mrb[0].mxu0 %v124
  %v398 = vpop.f32.mrb[0].mxu0
  %v399 = vadd.f32 %v244, %v398
  %v400 = vpop.f32.mrb[0].mxu0
  %401 = vmatprep.mubr.f32.mxu0 0.0
  %402 = vmatmul.mubr.f32.gmra.mrb[0].mxu0 %v127
  %v403 = vpop.f32.mrb[0].mxu0
  %v404 = vadd.f32 %v249, %v403
  %v405 = vpop.f32.mrb[0].mxu0
  %406 = vmatprep.mubr.f32.mxu0 0.0
  %407 = vmatmul.mubr.f32.gmra.mrb[0].mxu0 %v130
  %v408 = vpop.f32.mrb[0].mxu0
  %v409 = vadd.f32 %v254, %v408
  %v410 = vpop.f32.mrb[0].mxu0
  %411 = vmatprep.mubr.f32.mxu0 0.0
  %412 = vmatmul.mubr.f32.gmra.mrb[0].mxu0 %v133
  %v413 = vpop.f32.mrb[0].mxu0
  %v414 = vadd.f32 %v259, %v413
  %v415 = vpop.f32.mrb[0].mxu0
  %416 = vmatprep.mubr.f32.mxu0 0.0
  %417 = vmatmul.mubr.f32.gmra.mrb[0].mxu0 %v136
  %v418 = vpop.f32.mrb[0].mxu0
  %v419 = vadd.f32 %v264, %v418
  %v420 = vpop.f32.mrb[0].mxu0
  %421 = vmatprep.mubr.f32.mxu0 0.0
  %422 = vmatmul.mubr.f32.gmra.mrb[0].mxu0 %v139
  %v423 = vpop.f32.mrb[0].mxu0
  %v424 = vadd.f32 %v269, %v423
  %v425 = vpop.f32.mrb[0].mxu0
  %426 = vmatprep.mubr.f32.mxu0 0.0
  %427 = vmatmul.mubr.f32.gmra.mrb[0].mxu0 %v142
  %v428 = vpop.f32.mrb[0].mxu0
  %v429 = vadd.f32 %v274, %v428
  %v430 = vpop.f32.mrb[0].mxu0
  %431 = vmatprep.mubr.f32.mxu0 0.0
  %432 = vmatmul.mubr.f32.gmra.mrb[0].mxu0 %v145
  %v433 = vpop.f32.mrb[0].mxu0
  %v434 = vadd.f32 %v279, %v433
  %v435 = vpop.f32.mrb[0].mxu0
  %436 = vmatprep.mubr.f32.mxu0 0.0
  %437 = vmatmul.mubr.f32.gmra.mrb[0].mxu0 %v148
  %v438 = vpop.f32.mrb[0].mxu0
  %v439 = vadd.f32 %v284, %v438
  %v440 = vpop.f32.mrb[0].mxu0
  %441 = vmatprep.mubr.f32.mxu0 0.0
  %442 = vmatmul.mubr.f32.gmra.mrb[0].mxu0 %v151
  %v443 = vpop.f32.mrb[0].mxu0
  %v444 = vadd.f32 %v289, %v443
  %v445 = vpop.f32.mrb[0].mxu0
  %446 = vmatprep.mubr.f32.mxu0 0.0
  %447 = vmatmul.mubr.f32.gmra.mrb[0].mxu0 %v154
  %v448 = vpop.f32.mrb[0].mxu0
  %v449 = vadd.f32 %v294, %v448
  %v450 = vpop.f32.mrb[0].mxu0
  %451 = vmatprep.mubr.f32.mxu0 0.0
  %452 = vmatmul.mubr.f32.gmra.mrb[0].mxu0 %v157
  %v453 = vpop.f32.mrb[0].mxu0
  %v454 = vadd.f32 %v299, %v453
  %v455 = vpop.f32.mrb[0].mxu0
  %456 = vmatprep.mubr.f32.mxu0 0.0
  %457 = vmatmul.mubr.f32.gmra.mrb[0].mxu0 %v160
  %v458 = vpop.f32.mrb[0].mxu0
  %v459 = vadd.f32 %v304, %v458
  %v460 = vpop.f32.mrb[0].mxu0
  %461 = vmatprep.mubr.f32.mxu0 0.0
  %462 = vmatmul.mubr.f32.gmra.mrb[0].mxu0 %v163
  %v463 = vpop.f32.mrb[0].mxu0
  %v464 = vadd.f32 %v309, %v463
  %v465 = vpop.f32.mrb[0].mxu0
  %466 = vmatprep.mubr.f32.mxu0 0.0
  %467 = vmatmul.mubr.f32.gmra.mrb[0].mxu0 %v166
  %v468 = vpop.f32.mrb[0].mxu0
  %v469 = vadd.f32 %v314, %v468
  %v470 = vpop.f32.mrb[0].mxu0
  %471 = vmatprep.mubr.f32.mxu0 0.0
  %472 = vmatmul.mubr.f32.gmra.mrb[0].mxu0 %v169
  %v473 = vpop.f32.mrb[0].mxu0
  %v474 = vadd.f32 %v319, %v473
  %v475 = vpop.f32.mrb[0].mxu0
  %476 = vmatprep.mubr.f32.mxu0 0.0
  %477 = vmatmul.mubr.f32.gmra.mrb[0].mxu0 %v172
  %v478 = vpop.f32.mrb[0].mxu0
  %v479 = vadd.f32 %v324, %v478
  %v480 = vpop.f32.mrb[0].mxu0
  %481 = vmatprep.mubr.f32.mxu0 0.0
  %482 = vmatmul.mubr.f32.gmra.mrb[0].mxu0 %v175
  %v483 = vpop.f32.mrb[0].mxu0
  %v484 = vadd.f32 %v329, %v483
  %v485 = vpop.f32.mrb[0].mxu0
  %486 = vdwg.mxu0
  %v487 = vmax.f32 %v399, 0.0
  %v488 = vmax.f32 %v404, 0.0
  %v489 = vmax.f32 %v409, 0.0
  %v490 = vmax.f32 %v414, 0.0
  %v491 = vmax.f32 %v419, 0.0
  %v492 = vmax.f32 %v424, 0.0
  %v493 = vmax.f32 %v429, 0.0
  %v494 = vmax.f32 %v434, 0.0
  %v495 = vmax.f32 %v439, 0.0
  %v496 = vmax.f32 %v444, 0.0
  %v497 = vmax.f32 %v449, 0.0
  %v498 = vmax.f32 %v454, 0.0
  %v499 = vmax.f32 %v459, 0.0
  %v500 = vmax.f32 %v464, 0.0
  %v501 = vmax.f32 %v469, 0.0
  %v502 = vmax.f32 %v474, 0.0
  %v503 = vmax.f32 %v479, 0.0
  %v504 = vmax.f32 %v484, 0.0
  %v505 = vld [vmem:[%s1] sm:$0xff]
  %v506 = vld [vmem:[%s1 + $0x8] sm:$0xff]
  %v507 = vld [vmem:[%s1 + $0x10] sm:$0xff]
  %v508 = vld [vmem:[%s1 + $0x18] sm:$0xff]
  %v509 = vld [vmem:[%s1 + $0x20] sm:$0xff]
  %v510 = vld [vmem:[%s1 + $0x28] sm:$0xff]
  %v511 = vld [vmem:[%s1 + $0x30] sm:$0xff]
  %v512 = vld [vmem:[%s1 + $0x38] sm:$0xff]
  %v513 = vld [vmem:[%s1 + $0x40] sm:$0xff]
  %v514 = vld [vmem:[%s1 + $0x48] sm:$0xff]
  %v515 = vld [vmem:[%s1 + $0x50] sm:$0xff]
  %v516 = vld [vmem:[%s1 + $0x58] sm:$0xff]
  %v517 = vld [vmem:[%s1 + $0x60] sm:$0xff]
  %v518 = vld [vmem:[%s1 + $0x68] sm:$0xff]
  %v519 = vld [vmem:[%s1 + $0x70] sm:$0xff]
  %v520 = vld [vmem:[%s1 + $0x78] sm:$0xff]
  %v522 = vsel %vm122, %v506, 0
  %v525 = vsel %vm122, %v508, 0
  %v528 = vsel %vm122, %v510, 0
  %v531 = vsel %vm122, %v512, 0
  %v534 = vsel %vm122, %v514, 0
  %v537 = vsel %vm122, %v516, 0
  %v540 = vsel %vm122, %v518, 0
  %v543 = vsel %vm122, %v520, 0
  %545 = vmatprep.subr.mxu0 0.0
  %546 = vmatpush1.msra.mxu0 %v487
  %547 = vmatprep.subr.mxu0 0.0
  %548 = vmatpush1.msra.mxu0 %v488
  %549 = vmatprep.subr.mxu0 0.0
  %550 = vmatpush1.msra.mxu0 %v489
  %551 = vmatprep.subr.mxu0 0.0
  %552 = vmatpush1.msra.mxu0 %v490
  %553 = vmatprep.subr.mxu0 0.0
  %554 = vmatpush1.msra.mxu0 %v491
  %555 = vmatprep.subr.mxu0 0.0
  %556 = vmatpush1.msra.mxu0 %v492
  %557 = vmatprep.subr.mxu0 0.0
  %558 = vmatpush1.msra.mxu0 %v493
  %559 = vmatprep.subr.mxu0 0.0
  %560 = vmatpush1.msra.mxu0 %v494
  %561 = vmatprep.subr.mxu0 0.0
  %562 = vmatpush1.msra.mxu0 %v495
  %563 = vmatprep.subr.mxu0 0.0
  %564 = vmatpush1.msra.mxu0 %v496
  %565 = vmatprep.subr.mxu0 0.0
  %566 = vmatpush1.msra.mxu0 %v497
  %567 = vmatprep.subr.mxu0 0.0
  %568 = vmatpush1.msra.mxu0 %v498
  %569 = vmatprep.subr.mxu0 0.0
  %570 = vmatpush1.msra.mxu0 %v499
  %571 = vmatprep.subr.mxu0 0.0
  %572 = vmatpush1.msra.mxu0 %v500
  %573 = vmatprep.subr.mxu0 0.0
  %574 = vmatpush1.msra.mxu0 %v501
  %575 = vmatprep.subr.mxu0 0.0
  %576 = vmatpush1.msra.mxu0 %v502
  %577 = vmatprep.subr.mxu0 0.0
  %578 = vmatpush1.msra.mxu0 %v503
  %579 = vmatprep.subr.mxu0 0.0
  %580 = vmatpush1.msra.mxu0 %v504
  %581 = vmatprep.subr.mxu0 0.0
  %582 = vmatpush1.msra.mxu0 0.0
  %583 = vmatprep.subr.mxu0 0.0
  %584 = vmatpush1.msra.mxu0 0.0
  %585 = vmatprep.subr.mxu0 0.0
  %586 = vmatpush1.msra.mxu0 0.0
  %587 = vmatprep.subr.mxu0 0.0
  %588 = vmatpush1.msra.mxu0 0.0
  %589 = vmatprep.subr.mxu0 0.0
  %590 = vmatpush1.msra.mxu0 0.0
  %591 = vmatprep.subr.mxu0 0.0
  %592 = vmatpush1.msra.mxu0 0.0
  %593 = vmatprep.subr.mxu0 0.0
  %594 = vmatpush1.msra.mxu0 0.0
  %595 = vmatprep.subr.mxu0 0.0
  %596 = vmatpush1.msra.mxu0 0.0
  %597 = vmatprep.subr.mxu0 0.0
  %598 = vmatpush1.msra.mxu0 0.0
  %599 = vmatprep.subr.mxu0 0.0
  %600 = vmatpush1.msra.mxu0 0.0
  %601 = vmatprep.subr.mxu0 0.0
  %602 = vmatpush1.msra.mxu0 0.0
  %603 = vmatprep.subr.mxu0 0.0
  %604 = vmatpush1.msra.mxu0 0.0
  %605 = vmatprep.subr.mxu0 0.0
  %606 = vmatpush1.msra.mxu0 0.0
  %607 = vmatprep.subr.mxu0 0.0
  %608 = vmatpush1.msra.mxu0 0.0
  %609 = vmatprep.mubr.f32.mxu0 %v522
  %610 = vmatmul.mubr.f32.gmra.mrb[0].mxu0 %v505
  %v611 = vpop.f32.mrb[0].mxu0
  %v612 = vadd.f32 0.0, %v611
  %v613 = vpop.f32.mrb[0].mxu0
  %614 = vmatprep.mubr.f32.mxu0 %v525
  %615 = vmatmul.mubr.f32.gmra.mrb[0].mxu0 %v507
  %v616 = vpop.f32.mrb[0].mxu0
  %v617 = vadd.f32 0.0, %v616
  %v618 = vpop.f32.mrb[0].mxu0
  %619 = vmatprep.mubr.f32.mxu0 %v528
  %620 = vmatmul.mubr.f32.gmra.mrb[0].mxu0 %v509
  %v621 = vpop.f32.mrb[0].mxu0
  %v622 = vadd.f32 0.0, %v621
  %v623 = vpop.f32.mrb[0].mxu0
  %624 = vmatprep.mubr.f32.mxu0 %v531
  %625 = vmatmul.mubr.f32.gmra.mrb[0].mxu0 %v511
  %v626 = vpop.f32.mrb[0].mxu0
  %v627 = vadd.f32 0.0, %v626
  %v628 = vpop.f32.mrb[0].mxu0
  %629 = vmatprep.mubr.f32.mxu0 %v534
  %630 = vmatmul.mubr.f32.gmra.mrb[0].mxu0 %v513
  %v631 = vpop.f32.mrb[0].mxu0
  %v632 = vadd.f32 0.0, %v631
  %v633 = vpop.f32.mrb[0].mxu0
  %634 = vmatprep.mubr.f32.mxu0 %v537
  %635 = vmatmul.mubr.f32.gmra.mrb[0].mxu0 %v515
  %v636 = vpop.f32.mrb[0].mxu0
  %v637 = vadd.f32 0.0, %v636
  %v638 = vpop.f32.mrb[0].mxu0
  %639 = vmatprep.mubr.f32.mxu0 %v540
  %640 = vmatmul.mubr.f32.gmra.mrb[0].mxu0 %v517
  %v641 = vpop.f32.mrb[0].mxu0
  %v642 = vadd.f32 0.0, %v641
  %v643 = vpop.f32.mrb[0].mxu0
  %644 = vmatprep.mubr.f32.mxu0 %v543
  %645 = vmatmul.mubr.f32.gmra.mrb[0].mxu0 %v519
  %v646 = vpop.f32.mrb[0].mxu0
  %v647 = vadd.f32 0.0, %v646
  %v648 = vpop.f32.mrb[0].mxu0
  %649 = vdwg.mxu0
  %v650 = vld [vmem:[%s3] sm:$0xff]
  %v651 = vld [vmem:[%s3 + $0x8] sm:$0xff]
  %v652 = vld [vmem:[%s3 + $0x18] sm:$0xff]
  %v653 = vld [vmem:[%s3 + $0x20] sm:$0xff]
  %v654 = vld [vmem:[%s3 + $0x30] sm:$0xff]
  %v655 = vld [vmem:[%s3 + $0x38] sm:$0xff]
  %v656 = vld [vmem:[%s3 + $0x48] sm:$0xff]
  %v657 = vld [vmem:[%s3 + $0x50] sm:$0xff]
  %666 = vrot.lane.b32.xlu0 %v612, 1
  %v667 = vpop.permute.xlu0 %666
  %668 = vrot.lane.b32.xlu0 %v617, 1
  %v669 = vpop.permute.xlu0 %668
  %670 = vrot.lane.b32.xlu0 %v622, 1
  %v671 = vpop.permute.xlu0 %670
  %672 = vrot.lane.b32.xlu0 %v627, 1
  %v673 = vpop.permute.xlu0 %672
  %674 = vrot.lane.b32.xlu0 %v632, 1
  %v675 = vpop.permute.xlu0 %674
  %676 = vrot.lane.b32.xlu0 %v637, 1
  %v677 = vpop.permute.xlu0 %676
  %678 = vrot.lane.b32.xlu0 %v642, 1
  %v679 = vpop.permute.xlu0 %678
  %680 = vrot.lane.b32.xlu0 %v647, 1
  %v681 = vpop.permute.xlu0 %680
  %vm690 = vcmask 7168
  %v691 = vsel %vm690, 0.0, %v667
  %v692 = vsel %vm690, 0.0, %v669
  %v693 = vsel %vm690, 0.0, %v671
  %v694 = vsel %vm690, 0.0, %v673
  %v695 = vsel %vm690, 0.0, %v675
  %v696 = vsel %vm690, 0.0, %v677
  %v697 = vsel %vm690, 0.0, %v679
  %v698 = vsel %vm690, 0.0, %v681
  %699 = vrot.lane.b32.xlu0 %v612, 127
  %v700 = vpop.permute.xlu0 %699
  %701 = vrot.lane.b32.xlu0 %v617, 127
  %v702 = vpop.permute.xlu0 %701
  %703 = vrot.lane.b32.xlu0 %v622, 127
  %v704 = vpop.permute.xlu0 %703
  %705 = vrot.lane.b32.xlu0 %v627, 127
  %v706 = vpop.permute.xlu0 %705
  %707 = vrot.lane.b32.xlu0 %v632, 127
  %v708 = vpop.permute.xlu0 %707
  %709 = vrot.lane.b32.xlu0 %v637, 127
  %v710 = vpop.permute.xlu0 %709
  %711 = vrot.lane.b32.xlu0 %v642, 127
  %v712 = vpop.permute.xlu0 %711
  %713 = vrot.lane.b32.xlu0 %v647, 127
  %v714 = vpop.permute.xlu0 %713
  %vm723 = vcmask 236544
  %v724 = vsel %vm723, %v700, 0.0
  %v725 = vsel %vm723, %v702, 0.0
  %v726 = vsel %vm723, %v704, 0.0
  %v727 = vsel %vm723, %v706, 0.0
  %v728 = vsel %vm723, %v708, 0.0
  %v729 = vsel %vm723, %v710, 0.0
  %v730 = vsel %vm723, %v712, 0.0
  %v731 = vsel %vm723, %v714, 0.0
  %v732 = vld [vmem:[%s4] sm:$0xff]
  %v733 = vld [vmem:[%s4 + $0x8] sm:$0xff]
  %v734 = vld [vmem:[%s4 + $0x10] sm:$0xff]
  %v735 = vld [vmem:[%s4 + $0x18] sm:$0xff]
  %737 = vset.pattern.permute.xlu0 0
  %738 = vperm.xlu0 %737, %v732
  %v739 = vpop.permute.xlu0 %738
  %742 = vset.pattern.permute.xlu0 0
  %743 = vperm.xlu0 %742, %v733
  %v744 = vpop.permute.xlu0 %743
  %747 = vset.pattern.permute.xlu0 0
  %748 = vperm.xlu0 %747, %v734
  %v749 = vpop.permute.xlu0 %748
  %752 = vset.pattern.permute.xlu0 0
  %753 = vperm.xlu0 %752, %v735
  %v754 = vpop.permute.xlu0 %753
  %vm756 = vcmask 523264
  %v758 = vsel %vm756, %v651, 0
  %v761 = vsel %vm756, %v653, 0
  %v764 = vsel %vm756, %v655, 0
  %v767 = vsel %vm756, %v657, 0
  %769 = vmatprep.subr.mxu0 0.0
  %770 = vmatpush1.msra.mxu0 %v691
  %771 = vmatprep.subr.mxu0 0.0
  %772 = vmatpush1.msra.mxu0 %v692
  %773 = vmatprep.subr.mxu0 0.0
  %774 = vmatpush1.msra.mxu0 %v693
  %775 = vmatprep.subr.mxu0 0.0
  %776 = vmatpush1.msra.mxu0 %v694
  %777 = vmatprep.subr.mxu0 0.0
  %778 = vmatpush1.msra.mxu0 %v695
  %779 = vmatprep.subr.mxu0 0.0
  %780 = vmatpush1.msra.mxu0 %v696
  %781 = vmatprep.subr.mxu0 0.0
  %782 = vmatpush1.msra.mxu0 %v697
  %783 = vmatprep.subr.mxu0 0.0
  %784 = vmatpush1.msra.mxu0 %v698
  %785 = vmatprep.subr.mxu0 0.0
  %786 = vmatpush1.msra.mxu0 %v612
  %787 = vmatprep.subr.mxu0 0.0
  %788 = vmatpush1.msra.mxu0 %v617
  %789 = vmatprep.subr.mxu0 0.0
  %790 = vmatpush1.msra.mxu0 %v622
  %791 = vmatprep.subr.mxu0 0.0
  %792 = vmatpush1.msra.mxu0 %v627
  %793 = vmatprep.subr.mxu0 0.0
  %794 = vmatpush1.msra.mxu0 %v632
  %795 = vmatprep.subr.mxu0 0.0
  %796 = vmatpush1.msra.mxu0 %v637
  %797 = vmatprep.subr.mxu0 0.0
  %798 = vmatpush1.msra.mxu0 %v642
  %799 = vmatprep.subr.mxu0 0.0
  %800 = vmatpush1.msra.mxu0 %v647
  %801 = vmatprep.subr.mxu0 0.0
  %802 = vmatpush1.msra.mxu0 %v724
  %803 = vmatprep.subr.mxu0 0.0
  %804 = vmatpush1.msra.mxu0 %v725
  %805 = vmatprep.subr.mxu0 0.0
  %806 = vmatpush1.msra.mxu0 %v726
  %807 = vmatprep.subr.mxu0 0.0
  %808 = vmatpush1.msra.mxu0 %v727
  %809 = vmatprep.subr.mxu0 0.0
  %810 = vmatpush1.msra.mxu0 %v728
  %811 = vmatprep.subr.mxu0 0.0
  %812 = vmatpush1.msra.mxu0 %v729
  %813 = vmatprep.subr.mxu0 0.0
  %814 = vmatpush1.msra.mxu0 %v730
  %815 = vmatprep.subr.mxu0 0.0
  %816 = vmatpush1.msra.mxu0 %v731
  %817 = vmatprep.subr.mxu0 0.0
  %818 = vmatpush1.msra.mxu0 0.0
  %819 = vmatprep.subr.mxu0 0.0
  %820 = vmatpush1.msra.mxu0 0.0
  %821 = vmatprep.subr.mxu0 0.0
  %822 = vmatpush1.msra.mxu0 0.0
  %823 = vmatprep.subr.mxu0 0.0
  %824 = vmatpush1.msra.mxu0 0.0
  %825 = vmatprep.subr.mxu0 0.0
  %826 = vmatpush1.msra.mxu0 0.0
  %827 = vmatprep.subr.mxu0 0.0
  %828 = vmatpush1.msra.mxu0 0.0
  %829 = vmatprep.subr.mxu0 0.0
  %830 = vmatpush1.msra.mxu0 0.0
  %831 = vmatprep.subr.mxu0 0.0
  %832 = vmatpush1.msra.mxu0 0.0
  %833 = vmatprep.mubr.f32.mxu0 %v758
  %834 = vmatmul.mubr.f32.gmra.mrb[0].mxu0 %v650
  %v835 = vpop.f32.mrb[0].mxu0
  %v836 = vadd.f32 %v739, %v835
  %v837 = vpop.f32.mrb[0].mxu0
  %838 = vmatprep.mubr.f32.mxu0 %v761
  %839 = vmatmul.mubr.f32.gmra.mrb[0].mxu0 %v652
  %v840 = vpop.f32.mrb[0].mxu0
  %v841 = vadd.f32 %v744, %v840
  %v842 = vpop.f32.mrb[0].mxu0
  %843 = vmatprep.mubr.f32.mxu0 %v764
  %844 = vmatmul.mubr.f32.gmra.mrb[0].mxu0 %v654
  %v845 = vpop.f32.mrb[0].mxu0
  %v846 = vadd.f32 %v749, %v845
  %v847 = vpop.f32.mrb[0].mxu0
  %848 = vmatprep.mubr.f32.mxu0 %v767
  %849 = vmatmul.mubr.f32.gmra.mrb[0].mxu0 %v656
  %v850 = vpop.f32.mrb[0].mxu0
  %v851 = vadd.f32 %v754, %v850
  %v852 = vpop.f32.mrb[0].mxu0
  %853 = vdwg.mxu0
  %v854 = vmax.f32 %v836, 0.0
  %v855 = vmax.f32 %v841, 0.0
  %v856 = vmax.f32 %v846, 0.0
  %v857 = vmax.f32 %v851, 0.0
  %v858 = vld [vmem:[%s5] sm:$0xff]
  %v859 = vld [vmem:[%s5 + $0x8] sm:$0xff]
  %v860 = vld [vmem:[%s5 + $0x10] sm:$0xff]
  %v861 = vld [vmem:[%s5 + $0x18] sm:$0xff]
  %v862 = vld [vmem:[%s5 + $0x20] sm:$0xff]
  %v863 = vld [vmem:[%s5 + $0x28] sm:$0xff]
  %v864 = vld [vmem:[%s5 + $0x30] sm:$0x3f]
  %v865 = vld [vmem:[%s5 + $0x38] sm:$0x3f]
  %v866 = vld [vmem:[%s6] sm:$0xff]
  %v867 = vld [vmem:[%s8] sm:$0xff]
  %v868 = vld [vmem:[%s8 + $0x8] sm:$0xff]
  %v869 = vld [vmem:[%s8 + $0x10] sm:$0xff]
  %v870 = vld [vmem:[%s8 + $0x18] sm:$0xff]
  %v871 = vld [vmem:[%s6 + $0x10] sm:$0x3]
  %vm872 = vcmask 244736
  %v874 = vsel %vm872, %v854, 0
  %v877 = vsel %vm872, %v855, 0
  %v880 = vsel %vm872, %v856, 0
  %v883 = vsel %vm872, %v857, 0
  %vm885 = vcmask 1045504
  %v887 = vsel %vm885, %v864, 0
  %v890 = vsel %vm885, %v865, 0
  %892 = vmatprep.subr.mxu0 %v859
  %893 = vmatpush1.msra.mxu0 %v858
  %894 = vmatprep.subr.mxu0 %v861
  %895 = vmatpush1.msra.mxu0 %v860
  %896 = vmatprep.subr.mxu0 %v863
  %897 = vmatpush1.msra.mxu0 %v862
  %898 = vmatprep.subr.mxu0 %v890
  %899 = vmatpush1.msra.mxu0 %v887
  %900 = vmatprep.subr.mxu0 0.0
  %901 = vmatpush1.msra.mxu0 0.0
  %902 = vmatprep.subr.mxu0 0.0
  %903 = vmatpush1.msra.mxu0 0.0
  %904 = vmatprep.subr.mxu0 0.0
  %905 = vmatpush1.msra.mxu0 0.0
  %906 = vmatprep.subr.mxu0 0.0
  %907 = vmatpush1.msra.mxu0 0.0
  %908 = vmatprep.subr.mxu0 0.0
  %909 = vmatpush1.msra.mxu0 0.0
  %910 = vmatprep.subr.mxu0 0.0
  %911 = vmatpush1.msra.mxu0 0.0
  %912 = vmatprep.subr.mxu0 0.0
  %913 = vmatpush1.msra.mxu0 0.0
  %914 = vmatprep.subr.mxu0 0.0
  %915 = vmatpush1.msra.mxu0 0.0
  %916 = vmatprep.subr.mxu0 0.0
  %917 = vmatpush1.msra.mxu0 0.0
  %918 = vmatprep.subr.mxu0 0.0
  %919 = vmatpush1.msra.mxu0 0.0
  %920 = vmatprep.subr.mxu0 0.0
  %921 = vmatpush1.msra.mxu0 0.0
  %922 = vmatprep.subr.mxu0 0.0
  %923 = vmatpush1.msra.mxu0 0.0
  %924 = vmatprep.subr.mxu0 0.0
  %925 = vmatpush1.msra.mxu0 0.0
  %926 = vmatprep.subr.mxu0 0.0
  %927 = vmatpush1.msra.mxu0 0.0
  %928 = vmatprep.subr.mxu0 0.0
  %929 = vmatpush1.msra.mxu0 0.0
  %930 = vmatprep.subr.mxu0 0.0
  %931 = vmatpush1.msra.mxu0 0.0
  %932 = vmatprep.subr.mxu0 0.0
  %933 = vmatpush1.msra.mxu0 0.0
  %934 = vmatprep.subr.mxu0 0.0
  %935 = vmatpush1.msra.mxu0 0.0
  %936 = vmatprep.subr.mxu0 0.0
  %937 = vmatpush1.msra.mxu0 0.0
  %938 = vmatprep.subr.mxu0 0.0
  %939 = vmatpush1.msra.mxu0 0.0
  %940 = vmatprep.subr.mxu0 0.0
  %941 = vmatpush1.msra.mxu0 0.0
  %942 = vmatprep.subr.mxu0 0.0
  %943 = vmatpush1.msra.mxu0 0.0
  %944 = vmatprep.subr.mxu0 0.0
  %945 = vmatpush1.msra.mxu0 0.0
  %946 = vmatprep.subr.mxu0 0.0
  %947 = vmatpush1.msra.mxu0 0.0
  %948 = vmatprep.subr.mxu0 0.0
  %949 = vmatpush1.msra.mxu0 0.0
  %950 = vmatprep.subr.mxu0 0.0
  %951 = vmatpush1.msra.mxu0 0.0
  %952 = vmatprep.subr.mxu0 0.0
  %953 = vmatpush1.msra.mxu0 0.0
  %954 = vmatprep.subr.mxu0 0.0
  %955 = vmatpush1.msra.mxu0 0.0
  %956 = vmatprep.mubr.f32.mxu0 0.0
  %957 = vmatmul.mubr.f32.gmra.mrb[0].mxu0 %v874
  %v958 = vpop.f32.mrb[0].mxu0
  %v959 = vadd.f32 0.0, %v958
  %v960 = vpop.f32.mrb[0].mxu0
  %v961 = vadd.f32 0.0, %v960
  %962 = vmatprep.mubr.f32.mxu0 0.0
  %963 = vmatmul.mubr.f32.gmra.mrb[0].mxu0 %v877
  %v964 = vpop.f32.mrb[0].mxu0
  %v965 = vadd.f32 0.0, %v964
  %v966 = vpop.f32.mrb[0].mxu0
  %v967 = vadd.f32 0.0, %v966
  %968 = vmatprep.mubr.f32.mxu0 0.0
  %969 = vmatmul.mubr.f32.gmra.mrb[0].mxu0 %v880
  %v970 = vpop.f32.mrb[0].mxu0
  %v971 = vadd.f32 0.0, %v970
  %v972 = vpop.f32.mrb[0].mxu0
  %v973 = vadd.f32 0.0, %v972
  %974 = vmatprep.mubr.f32.mxu0 0.0
  %975 = vmatmul.mubr.f32.gmra.mrb[0].mxu0 %v883
  %v976 = vpop.f32.mrb[0].mxu0
  %v977 = vadd.f32 0.0, %v976
  %v978 = vpop.f32.mrb[0].mxu0
  %v979 = vadd.f32 0.0, %v978
  %980 = vdwg.mxu0
  %v981 = vmul.f32 %v959, %v959
  %v982 = vmul.f32 %v965, %v965
  %v983 = vmul.f32 %v971, %v971
  %v984 = vmul.f32 %v977, %v977
  %v985 = vmul.f32 %v961, %v961
  %v986 = vmul.f32 %v967, %v967
  %v987 = vmul.f32 %v973, %v973
  %v988 = vmul.f32 %v979, %v979
  %v989 = vadd.f32 %v981, %v985
  %v990 = vadd.f32 %v982, %v986
  %v991 = vadd.f32 %v983, %v987
  %v992 = vadd.f32 %v984, %v988
  %vm993 = vcmask 326656
  %v994 = vsel %vm993, %v989, 0.0
  %995 = vadd.xlane.f32.xlu0 %v994
  %v996 = vpop.xlane.xlu0 %995
  %v997 = vsel %vm993, %v990, 0.0
  %998 = vadd.xlane.f32.xlu0 %v997
  %v999 = vpop.xlane.xlu0 %998
  %v1000 = vsel %vm993, %v991, 0.0
  %1001 = vadd.xlane.f32.xlu0 %v1000
  %v1002 = vpop.xlane.xlu0 %1001
  %v1003 = vsel %vm993, %v992, 0.0
  %1004 = vadd.xlane.f32.xlu0 %v1003
  %v1005 = vpop.xlane.xlu0 %1004
  %v1006 = vrcp.pop 40.0
  %v1007 = vmul.f32 %v996, %v1006
  %v1008 = vmul.f32 %v999, %v1006
  %v1009 = vmul.f32 %v1002, %v1006
  %v1010 = vmul.f32 %v1005, %v1006
  %vm1011 = vcmask 261120
  %v1013 = vsel %vm1011, %v866, 0
  %1015 = vmatprep.subr.mxu0 0.0
  %1016 = vmatpush1.msra.mxu0 %v1007
  %1017 = vmatprep.subr.mxu0 0.0
  %1018 = vmatpush1.msra.mxu0 %v1008
  %1019 = vmatprep.subr.mxu0 0.0
  %1020 = vmatpush1.msra.mxu0 %v1009
  %1021 = vmatprep.subr.mxu0 0.0
  %1022 = vmatpush1.msra.mxu0 %v1010
  %1023 = vmatprep.subr.mxu0 0.0
  %1024 = vmatpush1.msra.mxu0 0.0
  %1025 = vmatprep.subr.mxu0 0.0
  %1026 = vmatpush1.msra.mxu0 0.0
  %1027 = vmatprep.subr.mxu0 0.0
  %1028 = vmatpush1.msra.mxu0 0.0
  %1029 = vmatprep.subr.mxu0 0.0
  %1030 = vmatpush1.msra.mxu0 0.0
  %1031 = vmatprep.subr.mxu0 0.0
  %1032 = vmatpush1.msra.mxu0 0.0
  %1033 = vmatprep.subr.mxu0 0.0
  %1034 = vmatpush1.msra.mxu0 0.0
  %1035 = vmatprep.subr.mxu0 0.0
  %1036 = vmatpush1.msra.mxu0 0.0
  %1037 = vmatprep.subr.mxu0 0.0
  %1038 = vmatpush1.msra.mxu0 0.0
  %1039 = vmatprep.subr.mxu0 0.0
  %1040 = vmatpush1.msra.mxu0 0.0
  %1041 = vmatprep.subr.mxu0 0.0
  %1042 = vmatpush1.msra.mxu0 0.0
  %1043 = vmatprep.subr.mxu0 0.0
  %1044 = vmatpush1.msra.mxu0 0.0
  %1045 = vmatprep.subr.mxu0 0.0
  %1046 = vmatpush1.msra.mxu0 0.0
  %1047 = vmatprep.subr.mxu0 0.0
  %1048 = vmatpush1.msra.mxu0 0.0
  %1049 = vmatprep.subr.mxu0 0.0
  %1050 = vmatpush1.msra.mxu0 0.0
  %1051 = vmatprep.subr.mxu0 0.0
  %1052 = vmatpush1.msra.mxu0 0.0
  %1053 = vmatprep.subr.mxu0 0.0
  %1054 = vmatpush1.msra.mxu0 0.0
  %1055 = vmatprep.subr.mxu0 0.0
  %1056 = vmatpush1.msra.mxu0 0.0
  %1057 = vmatprep.subr.mxu0 0.0
  %1058 = vmatpush1.msra.mxu0 0.0
  %1059 = vmatprep.subr.mxu0 0.0
  %1060 = vmatpush1.msra.mxu0 0.0
  %1061 = vmatprep.subr.mxu0 0.0
  %1062 = vmatpush1.msra.mxu0 0.0
  %1063 = vmatprep.subr.mxu0 0.0
  %1064 = vmatpush1.msra.mxu0 0.0
  %1065 = vmatprep.subr.mxu0 0.0
  %1066 = vmatpush1.msra.mxu0 0.0
  %1067 = vmatprep.subr.mxu0 0.0
  %1068 = vmatpush1.msra.mxu0 0.0
  %1069 = vmatprep.subr.mxu0 0.0
  %1070 = vmatpush1.msra.mxu0 0.0
  %1071 = vmatprep.subr.mxu0 0.0
  %1072 = vmatpush1.msra.mxu0 0.0
  %1073 = vmatprep.subr.mxu0 0.0
  %1074 = vmatpush1.msra.mxu0 0.0
  %1075 = vmatprep.subr.mxu0 0.0
  %1076 = vmatpush1.msra.mxu0 0.0
  %1077 = vmatprep.subr.mxu0 0.0
  %1078 = vmatpush1.msra.mxu0 0.0
  %1079 = vmatprep.mubr.f32.mxu0 0.0
  %1080 = vmatmul.mubr.f32.gmra.mrb[0].mxu0 %v1013
  %v1081 = vpop.f32.mrb[0].mxu0
  %v1082 = vadd.f32 0.0, %v1081
  %v1083 = vpop.f32.mrb[0].mxu0
  %1084 = vdwg.mxu0
  %v1085 = vmax.f32 %v1082, 0.0
  %vm1086 = vcmask 64512
  %v1088 = vsel %vm1086, %v867, 0
  %v1091 = vsel %vm1086, %v868, 0
  %v1094 = vsel %vm1086, %v869, 0
  %v1097 = vsel %vm1086, %v870, 0
  %1099 = vmatprep.subr.mxu0 0.0
  %1100 = vmatpush1.msra.mxu0 %v1085
  %1101 = vmatprep.subr.mxu0 0.0
  %1102 = vmatpush1.msra.mxu0 0.0
  %1103 = vmatprep.subr.mxu0 0.0
  %1104 = vmatpush1.msra.mxu0 0.0
  %1105 = vmatprep.subr.mxu0 0.0
  %1106 = vmatpush1.msra.mxu0 0.0
  %1107 = vmatprep.subr.mxu0 0.0
  %1108 = vmatpush1.msra.mxu0 0.0
  %1109 = vmatprep.subr.mxu0 0.0
  %1110 = vmatpush1.msra.mxu0 0.0
  %1111 = vmatprep.subr.mxu0 0.0
  %1112 = vmatpush1.msra.mxu0 0.0
  %1113 = vmatprep.subr.mxu0 0.0
  %1114 = vmatpush1.msra.mxu0 0.0
  %1115 = vmatprep.subr.mxu0 0.0
  %1116 = vmatpush1.msra.mxu0 0.0
  %1117 = vmatprep.subr.mxu0 0.0
  %1118 = vmatpush1.msra.mxu0 0.0
  %1119 = vmatprep.subr.mxu0 0.0
  %1120 = vmatpush1.msra.mxu0 0.0
  %1121 = vmatprep.subr.mxu0 0.0
  %1122 = vmatpush1.msra.mxu0 0.0
  %1123 = vmatprep.subr.mxu0 0.0
  %1124 = vmatpush1.msra.mxu0 0.0
  %1125 = vmatprep.subr.mxu0 0.0
  %1126 = vmatpush1.msra.mxu0 0.0
  %1127 = vmatprep.subr.mxu0 0.0
  %1128 = vmatpush1.msra.mxu0 0.0
  %1129 = vmatprep.subr.mxu0 0.0
  %1130 = vmatpush1.msra.mxu0 0.0
  %1131 = vmatprep.subr.mxu0 0.0
  %1132 = vmatpush1.msra.mxu0 0.0
  %1133 = vmatprep.subr.mxu0 0.0
  %1134 = vmatpush1.msra.mxu0 0.0
  %1135 = vmatprep.subr.mxu0 0.0
  %1136 = vmatpush1.msra.mxu0 0.0
  %1137 = vmatprep.subr.mxu0 0.0
  %1138 = vmatpush1.msra.mxu0 0.0
  %1139 = vmatprep.subr.mxu0 0.0
  %1140 = vmatpush1.msra.mxu0 0.0
  %1141 = vmatprep.subr.mxu0 0.0
  %1142 = vmatpush1.msra.mxu0 0.0
  %1143 = vmatprep.subr.mxu0 0.0
  %1144 = vmatpush1.msra.mxu0 0.0
  %1145 = vmatprep.subr.mxu0 0.0
  %1146 = vmatpush1.msra.mxu0 0.0
  %1147 = vmatprep.subr.mxu0 0.0
  %1148 = vmatpush1.msra.mxu0 0.0
  %1149 = vmatprep.subr.mxu0 0.0
  %1150 = vmatpush1.msra.mxu0 0.0
  %1151 = vmatprep.subr.mxu0 0.0
  %1152 = vmatpush1.msra.mxu0 0.0
  %1153 = vmatprep.subr.mxu0 0.0
  %1154 = vmatpush1.msra.mxu0 0.0
  %1155 = vmatprep.subr.mxu0 0.0
  %1156 = vmatpush1.msra.mxu0 0.0
  %1157 = vmatprep.subr.mxu0 0.0
  %1158 = vmatpush1.msra.mxu0 0.0
  %1159 = vmatprep.subr.mxu0 0.0
  %1160 = vmatpush1.msra.mxu0 0.0
  %1161 = vmatprep.subr.mxu0 0.0
  %1162 = vmatpush1.msra.mxu0 0.0
  %1163 = vmatprep.mubr.f32.mxu0 0.0
  %1164 = vmatmul.mubr.f32.gmra.mrb[0].mxu0 %v1088
  %v1165 = vpop.f32.mrb[0].mxu0
  %v1166 = vadd.f32 0.0, %v1165
  %v1167 = vpop.f32.mrb[0].mxu0
  %1168 = vmatprep.mubr.f32.mxu0 0.0
  %1169 = vmatmul.mubr.f32.gmra.mrb[0].mxu0 %v1091
  %v1170 = vpop.f32.mrb[0].mxu0
  %v1171 = vadd.f32 0.0, %v1170
  %v1172 = vpop.f32.mrb[0].mxu0
  %1173 = vmatprep.mubr.f32.mxu0 0.0
  %1174 = vmatmul.mubr.f32.gmra.mrb[0].mxu0 %v1094
  %v1175 = vpop.f32.mrb[0].mxu0
  %v1176 = vadd.f32 0.0, %v1175
  %v1177 = vpop.f32.mrb[0].mxu0
  %1178 = vmatprep.mubr.f32.mxu0 0.0
  %1179 = vmatmul.mubr.f32.gmra.mrb[0].mxu0 %v1097
  %v1180 = vpop.f32.mrb[0].mxu0
  %v1181 = vadd.f32 0.0, %v1180
  %v1182 = vpop.f32.mrb[0].mxu0
  %1183 = vdwg.mxu0
  %v1184 = vmul.f32 %v1166, 0.5
  %v1185 = vmul.f32 %v1171, 0.5
  %v1186 = vmul.f32 %v1176, 0.5
  %v1187 = vmul.f32 %v1181, 0.5
  %v1188 = vtanh.pop %v1184
  %v1189 = vtanh.pop %v1185
  %v1190 = vtanh.pop %v1186
  %v1191 = vtanh.pop %v1187
  %v1192 = vadd.f32 %v1188, 1.0
  %v1193 = vadd.f32 %v1189, 1.0
  %v1194 = vadd.f32 %v1190, 1.0
  %v1195 = vadd.f32 %v1191, 1.0
  %v1196 = vmul.f32 %v1192, 0.5
  %v1197 = vmul.f32 %v1193, 0.5
  %v1198 = vmul.f32 %v1194, 0.5
  %v1199 = vmul.f32 %v1195, 0.5
  %v1200 = vsel %vm993, %v989, -inf
  %1201 = vmax.xlane.f32.xlu0 %v1200
  %v1202 = vpop.xlane.xlu0 %1201
  %v1203 = vsel %vm993, %v990, -inf
  %1204 = vmax.xlane.f32.xlu0 %v1203
  %v1205 = vpop.xlane.xlu0 %1204
  %v1206 = vsel %vm993, %v991, -inf
  %1207 = vmax.xlane.f32.xlu0 %v1206
  %v1208 = vpop.xlane.xlu0 %1207
  %v1209 = vsel %vm993, %v992, -inf
  %1210 = vmax.xlane.f32.xlu0 %v1209
  %v1211 = vpop.xlane.xlu0 %1210
  %v1212 = vsub.f32 %v989, %v1202
  %v1213 = vsub.f32 %v990, %v1205
  %v1214 = vsub.f32 %v991, %v1208
  %v1215 = vsub.f32 %v992, %v1211
  %v1216 = vmul.f32 %v1212, 1.442695
  %v1217 = vpow.pop %v1216
  %v1218 = vmul.f32 %v1213, 1.442695
  %v1219 = vpow.pop %v1218
  %v1220 = vmul.f32 %v1214, 1.442695
  %v1221 = vpow.pop %v1220
  %v1222 = vmul.f32 %v1215, 1.442695
  %v1223 = vpow.pop %v1222
  %v1224 = vsel %vm993, %v1217, 0.0
  %1225 = vadd.xlane.f32.xlu0 %v1224
  %v1226 = vpop.xlane.xlu0 %1225
  %v1227 = vsel %vm993, %v1219, 0.0
  %1228 = vadd.xlane.f32.xlu0 %v1227
  %v1229 = vpop.xlane.xlu0 %1228
  %v1230 = vsel %vm993, %v1221, 0.0
  %1231 = vadd.xlane.f32.xlu0 %v1230
  %v1232 = vpop.xlane.xlu0 %1231
  %v1233 = vsel %vm993, %v1223, 0.0
  %1234 = vadd.xlane.f32.xlu0 %v1233
  %v1235 = vpop.xlane.xlu0 %1234
  %v1236 = vrcp.pop %v1226
  %v1237 = vrcp.pop %v1229
  %v1238 = vrcp.pop %v1232
  %v1239 = vrcp.pop %v1235
  %v1240 = vmul.f32 %v1217, %v1236
  %v1241 = vmul.f32 %v1219, %v1237
  %v1242 = vmul.f32 %v1221, %v1238
  %v1243 = vmul.f32 %v1223, %v1239
  %v1245 = vsel %vm1011, %v871, 0
  %1247 = vmatprep.subr.mxu0 0.0
  %1248 = vmatpush1.msra.mxu0 %v1240
  %1249 = vmatprep.subr.mxu0 0.0
  %1250 = vmatpush1.msra.mxu0 %v1241
  %1251 = vmatprep.subr.mxu0 0.0
  %1252 = vmatpush1.msra.mxu0 %v1242
  %1253 = vmatprep.subr.mxu0 0.0
  %1254 = vmatpush1.msra.mxu0 %v1243
  %1255 = vmatprep.subr.mxu0 0.0
  %1256 = vmatpush1.msra.mxu0 0.0
  %1257 = vmatprep.subr.mxu0 0.0
  %1258 = vmatpush1.msra.mxu0 0.0
  %1259 = vmatprep.subr.mxu0 0.0
  %1260 = vmatpush1.msra.mxu0 0.0
  %1261 = vmatprep.subr.mxu0 0.0
  %1262 = vmatpush1.msra.mxu0 0.0
  %1263 = vmatprep.subr.mxu0 0.0
  %1264 = vmatpush1.msra.mxu0 0.0
  %1265 = vmatprep.subr.mxu0 0.0
  %1266 = vmatpush1.msra.mxu0 0.0
  %1267 = vmatprep.subr.mxu0 0.0
  %1268 = vmatpush1.msra.mxu0 0.0
  %1269 = vmatprep.subr.mxu0 0.0
  %1270 = vmatpush1.msra.mxu0 0.0
  %1271 = vmatprep.subr.mxu0 0.0
  %1272 = vmatpush1.msra.mxu0 0.0
  %1273 = vmatprep.subr.mxu0 0.0
  %1274 = vmatpush1.msra.mxu0 0.0
  %1275 = vmatprep.subr.mxu0 0.0
  %1276 = vmatpush1.msra.mxu0 0.0
  %1277 = vmatprep.subr.mxu0 0.0
  %1278 = vmatpush1.msra.mxu0 0.0
  %1279 = vmatprep.subr.mxu0 0.0
  %1280 = vmatpush1.msra.mxu0 0.0
  %1281 = vmatprep.subr.mxu0 0.0
  %1282 = vmatpush1.msra.mxu0 0.0
  %1283 = vmatprep.subr.mxu0 0.0
  %1284 = vmatpush1.msra.mxu0 0.0
  %1285 = vmatprep.subr.mxu0 0.0
  %1286 = vmatpush1.msra.mxu0 0.0
  %1287 = vmatprep.subr.mxu0 0.0
  %1288 = vmatpush1.msra.mxu0 0.0
  %1289 = vmatprep.subr.mxu0 0.0
  %1290 = vmatpush1.msra.mxu0 0.0
  %1291 = vmatprep.subr.mxu0 0.0
  %1292 = vmatpush1.msra.mxu0 0.0
  %1293 = vmatprep.subr.mxu0 0.0
  %1294 = vmatpush1.msra.mxu0 0.0
  %1295 = vmatprep.subr.mxu0 0.0
  %1296 = vmatpush1.msra.mxu0 0.0
  %1297 = vmatprep.subr.mxu0 0.0
  %1298 = vmatpush1.msra.mxu0 0.0
  %1299 = vmatprep.subr.mxu0 0.0
  %1300 = vmatpush1.msra.mxu0 0.0
  %1301 = vmatprep.subr.mxu0 0.0
  %1302 = vmatpush1.msra.mxu0 0.0
  %1303 = vmatprep.subr.mxu0 0.0
  %1304 = vmatpush1.msra.mxu0 0.0
  %1305 = vmatprep.subr.mxu0 0.0
  %1306 = vmatpush1.msra.mxu0 0.0
  %1307 = vmatprep.subr.mxu0 0.0
  %1308 = vmatpush1.msra.mxu0 0.0
  %1309 = vmatprep.subr.mxu0 0.0
  %1310 = vmatpush1.msra.mxu0 0.0
  %1311 = vmatprep.mubr.f32.mxu0 0.0
  %1312 = vmatmul.mubr.f32.gmra.mrb[0].mxu0 %v1245
  %v1313 = vpop.f32.mrb[0].mxu0
  %v1314 = vadd.f32 0.0, %v1313
  %v1315 = vpop.f32.mrb[0].mxu0
  %1316 = vdwg.mxu0
  %1318 = vset.pattern.permute.xlu0 0
  %1319 = vperm.xlu0 %1318, %v1196
  %v1320 = vpop.permute.xlu0 %1319
  %1323 = vset.pattern.permute.xlu0 0
  %1324 = vperm.xlu0 %1323, %v1197
  %v1325 = vpop.permute.xlu0 %1324
  %1328 = vset.pattern.permute.xlu0 0
  %1329 = vperm.xlu0 %1328, %v1198
  %v1330 = vpop.permute.xlu0 %1329
  %1333 = vset.pattern.permute.xlu0 0
  %1334 = vperm.xlu0 %1333, %v1199
  %v1335 = vpop.permute.xlu0 %1334
  %v1337 = vmul.f32 %v854, %v1320
  %v1338 = vmul.f32 %v855, %v1325
  %v1339 = vmul.f32 %v856, %v1330
  %v1340 = vmul.f32 %v857, %v1335
  %v1341 = vadd.f32 %v854, %v1337
  %v1342 = vadd.f32 %v855, %v1338
  %v1343 = vadd.f32 %v856, %v1339
  %v1344 = vadd.f32 %v857, %v1340
  %v1345 = vmax.f32 %v1341, 0.0
  %v1346 = vmax.f32 %v1342, 0.0
  %v1347 = vmax.f32 %v1343, 0.0
  %v1348 = vmax.f32 %v1344, 0.0
  %v1349 = vld [vmem:[%s3 + $0x10] sm:$0xff]
  %v1350 = vld [vmem:[%s3 + $0x28] sm:$0xff]
  %v1351 = vld [vmem:[%s3 + $0x40] sm:$0xff]
  %v1352 = vld [vmem:[%s3 + $0x58] sm:$0xff]
  %1357 = vrot.lane.b32.xlu0 %v1345, 1
  %v1358 = vpop.permute.xlu0 %1357
  %1359 = vrot.lane.b32.xlu0 %v1346, 1
  %v1360 = vpop.permute.xlu0 %1359
  %1361 = vrot.lane.b32.xlu0 %v1347, 1
  %v1362 = vpop.permute.xlu0 %1361
  %1363 = vrot.lane.b32.xlu0 %v1348, 1
  %v1364 = vpop.permute.xlu0 %1363
  %v1369 = vsel %vm690, 0.0, %v1358
  %v1370 = vsel %vm690, 0.0, %v1360
  %v1371 = vsel %vm690, 0.0, %v1362
  %v1372 = vsel %vm690, 0.0, %v1364
  %1373 = vrot.lane.b32.xlu0 %v1345, 127
  %v1374 = vpop.permute.xlu0 %1373
  %1375 = vrot.lane.b32.xlu0 %v1346, 127
  %v1376 = vpop.permute.xlu0 %1375
  %1377 = vrot.lane.b32.xlu0 %v1347, 127
  %v1378 = vpop.permute.xlu0 %1377
  %1379 = vrot.lane.b32.xlu0 %v1348, 127
  %v1380 = vpop.permute.xlu0 %1379
  %v1385 = vsel %vm723, %v1374, 0.0
  %v1386 = vsel %vm723, %v1376, 0.0
  %v1387 = vsel %vm723, %v1378, 0.0
  %v1388 = vsel %vm723, %v1380, 0.0
  %v1389 = vld [vmem:[%s4 + $0x20] sm:$0xff]
  %v1390 = vld [vmem:[%s4 + $0x28] sm:$0xff]
  %v1391 = vld [vmem:[%s4 + $0x30] sm:$0xff]
  %v1392 = vld [vmem:[%s4 + $0x38] sm:$0xff]
  %1394 = vset.pattern.permute.xlu0 0
  %1395 = vperm.xlu0 %1394, %v1389
  %v1396 = vpop.permute.xlu0 %1395
  %1399 = vset.pattern.permute.xlu0 0
  %1400 = vperm.xlu0 %1399, %v1390
  %v1401 = vpop.permute.xlu0 %1400
  %1404 = vset.pattern.permute.xlu0 0
  %1405 = vperm.xlu0 %1404, %v1391
  %v1406 = vpop.permute.xlu0 %1405
  %1409 = vset.pattern.permute.xlu0 0
  %1410 = vperm.xlu0 %1409, %v1392
  %v1411 = vpop.permute.xlu0 %1410
  %vm1413 = vcmask 785408
  %v1415 = vsel %vm1413, %v1349, 0
  %v1418 = vsel %vm1413, %v1350, 0
  %v1421 = vsel %vm1413, %v1351, 0
  %v1424 = vsel %vm1413, %v1352, 0
  %1426 = vmatprep.subr.mxu0 0.0
  %1427 = vmatpush1.msra.mxu0 %v1369
  %1428 = vmatprep.subr.mxu0 0.0
  %1429 = vmatpush1.msra.mxu0 %v1370
  %1430 = vmatprep.subr.mxu0 0.0
  %1431 = vmatpush1.msra.mxu0 %v1371
  %1432 = vmatprep.subr.mxu0 0.0
  %1433 = vmatpush1.msra.mxu0 %v1372
  %1434 = vmatprep.subr.mxu0 0.0
  %1435 = vmatpush1.msra.mxu0 %v1345
  %1436 = vmatprep.subr.mxu0 0.0
  %1437 = vmatpush1.msra.mxu0 %v1346
  %1438 = vmatprep.subr.mxu0 0.0
  %1439 = vmatpush1.msra.mxu0 %v1347
  %1440 = vmatprep.subr.mxu0 0.0
  %1441 = vmatpush1.msra.mxu0 %v1348
  %1442 = vmatprep.subr.mxu0 0.0
  %1443 = vmatpush1.msra.mxu0 %v1385
  %1444 = vmatprep.subr.mxu0 0.0
  %1445 = vmatpush1.msra.mxu0 %v1386
  %1446 = vmatprep.subr.mxu0 0.0
  %1447 = vmatpush1.msra.mxu0 %v1387
  %1448 = vmatprep.subr.mxu0 0.0
  %1449 = vmatpush1.msra.mxu0 %v1388
  %1450 = vmatprep.subr.mxu0 0.0
  %1451 = vmatpush1.msra.mxu0 0.0
  %1452 = vmatprep.subr.mxu0 0.0
  %1453 = vmatpush1.msra.mxu0 0.0
  %1454 = vmatprep.subr.mxu0 0.0
  %1455 = vmatpush1.msra.mxu0 0.0
  %1456 = vmatprep.subr.mxu0 0.0
  %1457 = vmatpush1.msra.mxu0 0.0
  %1458 = vmatprep.subr.mxu0 0.0
  %1459 = vmatpush1.msra.mxu0 0.0
  %1460 = vmatprep.subr.mxu0 0.0
  %1461 = vmatpush1.msra.mxu0 0.0
  %1462 = vmatprep.subr.mxu0 0.0
  %1463 = vmatpush1.msra.mxu0 0.0
  %1464 = vmatprep.subr.mxu0 0.0
  %1465 = vmatpush1.msra.mxu0 0.0
  %1466 = vmatprep.subr.mxu0 0.0
  %1467 = vmatpush1.msra.mxu0 0.0
  %1468 = vmatprep.subr.mxu0 0.0
  %1469 = vmatpush1.msra.mxu0 0.0
  %1470 = vmatprep.subr.mxu0 0.0
  %1471 = vmatpush1.msra.mxu0 0.0
  %1472 = vmatprep.subr.mxu0 0.0
  %1473 = vmatpush1.msra.mxu0 0.0
  %1474 = vmatprep.subr.mxu0 0.0
  %1475 = vmatpush1.msra.mxu0 0.0
  %1476 = vmatprep.subr.mxu0 0.0
  %1477 = vmatpush1.msra.mxu0 0.0
  %1478 = vmatprep.subr.mxu0 0.0
  %1479 = vmatpush1.msra.mxu0 0.0
  %1480 = vmatprep.subr.mxu0 0.0
  %1481 = vmatpush1.msra.mxu0 0.0
  %1482 = vmatprep.subr.mxu0 0.0
  %1483 = vmatpush1.msra.mxu0 0.0
  %1484 = vmatprep.subr.mxu0 0.0
  %1485 = vmatpush1.msra.mxu0 0.0
  %1486 = vmatprep.subr.mxu0 0.0
  %1487 = vmatpush1.msra.mxu0 0.0
  %1488 = vmatprep.subr.mxu0 0.0
  %1489 = vmatpush1.msra.mxu0 0.0
  %1490 = vmatprep.mubr.f32.mxu0 0.0
  %1491 = vmatmul.mubr.f32.gmra.mrb[0].mxu0 %v1415
  %v1492 = vpop.f32.mrb[0].mxu0
  %v1493 = vadd.f32 %v1396, %v1492
  %v1494 = vpop.f32.mrb[0].mxu0
  %1495 = vmatprep.mubr.f32.mxu0 0.0
  %1496 = vmatmul.mubr.f32.gmra.mrb[0].mxu0 %v1418
  %v1497 = vpop.f32.mrb[0].mxu0
  %v1498 = vadd.f32 %v1401, %v1497
  %v1499 = vpop.f32.mrb[0].mxu0
  %1500 = vmatprep.mubr.f32.mxu0 0.0
  %1501 = vmatmul.mubr.f32.gmra.mrb[0].mxu0 %v1421
  %v1502 = vpop.f32.mrb[0].mxu0
  %v1503 = vadd.f32 %v1406, %v1502
  %v1504 = vpop.f32.mrb[0].mxu0
  %1505 = vmatprep.mubr.f32.mxu0 0.0
  %1506 = vmatmul.mubr.f32.gmra.mrb[0].mxu0 %v1424
  %v1507 = vpop.f32.mrb[0].mxu0
  %v1508 = vadd.f32 %v1411, %v1507
  %v1509 = vpop.f32.mrb[0].mxu0
  %1510 = vdwg.mxu0
  %v1511 = vmax.f32 %v1493, 0.0
  %v1512 = vmax.f32 %v1498, 0.0
  %v1513 = vmax.f32 %v1503, 0.0
  %v1514 = vmax.f32 %v1508, 0.0
  %v1515 = vld [vmem:[%s5 + $0x40] sm:$0xff]
  %v1516 = vld [vmem:[%s5 + $0x48] sm:$0xff]
  %v1517 = vld [vmem:[%s5 + $0x50] sm:$0xff]
  %v1518 = vld [vmem:[%s5 + $0x58] sm:$0xff]
  %v1519 = vld [vmem:[%s5 + $0x60] sm:$0xff]
  %v1520 = vld [vmem:[%s5 + $0x68] sm:$0xff]
  %v1521 = vld [vmem:[%s5 + $0x70] sm:$0x3f]
  %v1522 = vld [vmem:[%s5 + $0x78] sm:$0x3f]
  %v1523 = vld [vmem:[%s6 + $0x8] sm:$0xff]
  %v1524 = vld [vmem:[%s8 + $0x20] sm:$0xff]
  %v1525 = vld [vmem:[%s8 + $0x28] sm:$0xff]
  %v1526 = vld [vmem:[%s8 + $0x30] sm:$0xff]
  %v1527 = vld [vmem:[%s8 + $0x38] sm:$0xff]
  %v1528 = vld [vmem:[%s6 + $0x18] sm:$0x3]
  %v1530 = vsel %vm872, %v1511, 0
  %v1533 = vsel %vm872, %v1512, 0
  %v1536 = vsel %vm872, %v1513, 0
  %v1539 = vsel %vm872, %v1514, 0
  %v1542 = vsel %vm885, %v1521, 0
  %v1545 = vsel %vm885, %v1522, 0
  %1547 = vmatprep.subr.mxu0 %v1516
  %1548 = vmatpush1.msra.mxu0 %v1515
  %1549 = vmatprep.subr.mxu0 %v1518
  %1550 = vmatpush1.msra.mxu0 %v1517
  %1551 = vmatprep.subr.mxu0 %v1520
  %1552 = vmatpush1.msra.mxu0 %v1519
  %1553 = vmatprep.subr.mxu0 %v1545
  %1554 = vmatpush1.msra.mxu0 %v1542
  %1555 = vmatprep.subr.mxu0 0.0
  %1556 = vmatpush1.msra.mxu0 0.0
  %1557 = vmatprep.subr.mxu0 0.0
  %1558 = vmatpush1.msra.mxu0 0.0
  %1559 = vmatprep.subr.mxu0 0.0
  %1560 = vmatpush1.msra.mxu0 0.0
  %1561 = vmatprep.subr.mxu0 0.0
  %1562 = vmatpush1.msra.mxu0 0.0
  %1563 = vmatprep.subr.mxu0 0.0
  %1564 = vmatpush1.msra.mxu0 0.0
  %1565 = vmatprep.subr.mxu0 0.0
  %1566 = vmatpush1.msra.mxu0 0.0
  %1567 = vmatprep.subr.mxu0 0.0
  %1568 = vmatpush1.msra.mxu0 0.0
  %1569 = vmatprep.subr.mxu0 0.0
  %1570 = vmatpush1.msra.mxu0 0.0
  %1571 = vmatprep.subr.mxu0 0.0
  %1572 = vmatpush1.msra.mxu0 0.0
  %1573 = vmatprep.subr.mxu0 0.0
  %1574 = vmatpush1.msra.mxu0 0.0
  %1575 = vmatprep.subr.mxu0 0.0
  %1576 = vmatpush1.msra.mxu0 0.0
  %1577 = vmatprep.subr.mxu0 0.0
  %1578 = vmatpush1.msra.mxu0 0.0
  %1579 = vmatprep.subr.mxu0 0.0
  %1580 = vmatpush1.msra.mxu0 0.0
  %1581 = vmatprep.subr.mxu0 0.0
  %1582 = vmatpush1.msra.mxu0 0.0
  %1583 = vmatprep.subr.mxu0 0.0
  %1584 = vmatpush1.msra.mxu0 0.0
  %1585 = vmatprep.subr.mxu0 0.0
  %1586 = vmatpush1.msra.mxu0 0.0
  %1587 = vmatprep.subr.mxu0 0.0
  %1588 = vmatpush1.msra.mxu0 0.0
  %1589 = vmatprep.subr.mxu0 0.0
  %1590 = vmatpush1.msra.mxu0 0.0
  %1591 = vmatprep.subr.mxu0 0.0
  %1592 = vmatpush1.msra.mxu0 0.0
  %1593 = vmatprep.subr.mxu0 0.0
  %1594 = vmatpush1.msra.mxu0 0.0
  %1595 = vmatprep.subr.mxu0 0.0
  %1596 = vmatpush1.msra.mxu0 0.0
  %1597 = vmatprep.subr.mxu0 0.0
  %1598 = vmatpush1.msra.mxu0 0.0
  %1599 = vmatprep.subr.mxu0 0.0
  %1600 = vmatpush1.msra.mxu0 0.0
  %1601 = vmatprep.subr.mxu0 0.0
  %1602 = vmatpush1.msra.mxu0 0.0
  %1603 = vmatprep.subr.mxu0 0.0
  %1604 = vmatpush1.msra.mxu0 0.0
  %1605 = vmatprep.subr.mxu0 0.0
  %1606 = vmatpush1.msra.mxu0 0.0
  %1607 = vmatprep.subr.mxu0 0.0
  %1608 = vmatpush1.msra.mxu0 0.0
  %1609 = vmatprep.subr.mxu0 0.0
  %1610 = vmatpush1.msra.mxu0 0.0
  %1611 = vmatprep.mubr.f32.mxu0 0.0
  %1612 = vmatmul.mubr.f32.gmra.mrb[0].mxu0 %v1530
  %v1613 = vpop.f32.mrb[0].mxu0
  %v1614 = vadd.f32 0.0, %v1613
  %v1615 = vpop.f32.mrb[0].mxu0
  %v1616 = vadd.f32 0.0, %v1615
  %1617 = vmatprep.mubr.f32.mxu0 0.0
  %1618 = vmatmul.mubr.f32.gmra.mrb[0].mxu0 %v1533
  %v1619 = vpop.f32.mrb[0].mxu0
  %v1620 = vadd.f32 0.0, %v1619
  %v1621 = vpop.f32.mrb[0].mxu0
  %v1622 = vadd.f32 0.0, %v1621
  %1623 = vmatprep.mubr.f32.mxu0 0.0
  %1624 = vmatmul.mubr.f32.gmra.mrb[0].mxu0 %v1536
  %v1625 = vpop.f32.mrb[0].mxu0
  %v1626 = vadd.f32 0.0, %v1625
  %v1627 = vpop.f32.mrb[0].mxu0
  %v1628 = vadd.f32 0.0, %v1627
  %1629 = vmatprep.mubr.f32.mxu0 0.0
  %1630 = vmatmul.mubr.f32.gmra.mrb[0].mxu0 %v1539
  %v1631 = vpop.f32.mrb[0].mxu0
  %v1632 = vadd.f32 0.0, %v1631
  %v1633 = vpop.f32.mrb[0].mxu0
  %v1634 = vadd.f32 0.0, %v1633
  %1635 = vdwg.mxu0
  %v1636 = vmul.f32 %v1614, %v1614
  %v1637 = vmul.f32 %v1620, %v1620
  %v1638 = vmul.f32 %v1626, %v1626
  %v1639 = vmul.f32 %v1632, %v1632
  %v1640 = vmul.f32 %v1616, %v1616
  %v1641 = vmul.f32 %v1622, %v1622
  %v1642 = vmul.f32 %v1628, %v1628
  %v1643 = vmul.f32 %v1634, %v1634
  %v1644 = vadd.f32 %v1636, %v1640
  %v1645 = vadd.f32 %v1637, %v1641
  %v1646 = vadd.f32 %v1638, %v1642
  %v1647 = vadd.f32 %v1639, %v1643
  %v1648 = vsel %vm993, %v1644, 0.0
  %1649 = vadd.xlane.f32.xlu0 %v1648
  %v1650 = vpop.xlane.xlu0 %1649
  %v1651 = vsel %vm993, %v1645, 0.0
  %1652 = vadd.xlane.f32.xlu0 %v1651
  %v1653 = vpop.xlane.xlu0 %1652
  %v1654 = vsel %vm993, %v1646, 0.0
  %1655 = vadd.xlane.f32.xlu0 %v1654
  %v1656 = vpop.xlane.xlu0 %1655
  %v1657 = vsel %vm993, %v1647, 0.0
  %1658 = vadd.xlane.f32.xlu0 %v1657
  %v1659 = vpop.xlane.xlu0 %1658
  %v1660 = vmul.f32 %v1650, %v1006
  %v1661 = vmul.f32 %v1653, %v1006
  %v1662 = vmul.f32 %v1656, %v1006
  %v1663 = vmul.f32 %v1659, %v1006
  %v1665 = vsel %vm1011, %v1523, 0
  %1667 = vmatprep.subr.mxu0 0.0
  %1668 = vmatpush1.msra.mxu0 %v1660
  %1669 = vmatprep.subr.mxu0 0.0
  %1670 = vmatpush1.msra.mxu0 %v1661
  %1671 = vmatprep.subr.mxu0 0.0
  %1672 = vmatpush1.msra.mxu0 %v1662
  %1673 = vmatprep.subr.mxu0 0.0
  %1674 = vmatpush1.msra.mxu0 %v1663
  %1675 = vmatprep.subr.mxu0 0.0
  %1676 = vmatpush1.msra.mxu0 0.0
  %1677 = vmatprep.subr.mxu0 0.0
  %1678 = vmatpush1.msra.mxu0 0.0
  %1679 = vmatprep.subr.mxu0 0.0
  %1680 = vmatpush1.msra.mxu0 0.0
  %1681 = vmatprep.subr.mxu0 0.0
  %1682 = vmatpush1.msra.mxu0 0.0
  %1683 = vmatprep.subr.mxu0 0.0
  %1684 = vmatpush1.msra.mxu0 0.0
  %1685 = vmatprep.subr.mxu0 0.0
  %1686 = vmatpush1.msra.mxu0 0.0
  %1687 = vmatprep.subr.mxu0 0.0
  %1688 = vmatpush1.msra.mxu0 0.0
  %1689 = vmatprep.subr.mxu0 0.0
  %1690 = vmatpush1.msra.mxu0 0.0
  %1691 = vmatprep.subr.mxu0 0.0
  %1692 = vmatpush1.msra.mxu0 0.0
  %1693 = vmatprep.subr.mxu0 0.0
  %1694 = vmatpush1.msra.mxu0 0.0
  %1695 = vmatprep.subr.mxu0 0.0
  %1696 = vmatpush1.msra.mxu0 0.0
  %1697 = vmatprep.subr.mxu0 0.0
  %1698 = vmatpush1.msra.mxu0 0.0
  %1699 = vmatprep.subr.mxu0 0.0
  %1700 = vmatpush1.msra.mxu0 0.0
  %1701 = vmatprep.subr.mxu0 0.0
  %1702 = vmatpush1.msra.mxu0 0.0
  %1703 = vmatprep.subr.mxu0 0.0
  %1704 = vmatpush1.msra.mxu0 0.0
  %1705 = vmatprep.subr.mxu0 0.0
  %1706 = vmatpush1.msra.mxu0 0.0
  %1707 = vmatprep.subr.mxu0 0.0
  %1708 = vmatpush1.msra.mxu0 0.0
  %1709 = vmatprep.subr.mxu0 0.0
  %1710 = vmatpush1.msra.mxu0 0.0
  %1711 = vmatprep.subr.mxu0 0.0
  %1712 = vmatpush1.msra.mxu0 0.0
  %1713 = vmatprep.subr.mxu0 0.0
  %1714 = vmatpush1.msra.mxu0 0.0
  %1715 = vmatprep.subr.mxu0 0.0
  %1716 = vmatpush1.msra.mxu0 0.0
  %1717 = vmatprep.subr.mxu0 0.0
  %1718 = vmatpush1.msra.mxu0 0.0
  %1719 = vmatprep.subr.mxu0 0.0
  %1720 = vmatpush1.msra.mxu0 0.0
  %1721 = vmatprep.subr.mxu0 0.0
  %1722 = vmatpush1.msra.mxu0 0.0
  %1723 = vmatprep.subr.mxu0 0.0
  %1724 = vmatpush1.msra.mxu0 0.0
  %1725 = vmatprep.subr.mxu0 0.0
  %1726 = vmatpush1.msra.mxu0 0.0
  %1727 = vmatprep.subr.mxu0 0.0
  %1728 = vmatpush1.msra.mxu0 0.0
  %1729 = vmatprep.subr.mxu0 0.0
  %1730 = vmatpush1.msra.mxu0 0.0
  %1731 = vmatprep.mubr.f32.mxu0 0.0
  %1732 = vmatmul.mubr.f32.gmra.mrb[0].mxu0 %v1665
  %v1733 = vpop.f32.mrb[0].mxu0
  %v1734 = vadd.f32 0.0, %v1733
  %v1735 = vpop.f32.mrb[0].mxu0
  %1736 = vdwg.mxu0
  %v1737 = vmax.f32 %v1734, 0.0
  %v1739 = vsel %vm1086, %v1524, 0
  %v1742 = vsel %vm1086, %v1525, 0
  %v1745 = vsel %vm1086, %v1526, 0
  %v1748 = vsel %vm1086, %v1527, 0
  %1750 = vmatprep.subr.mxu0 0.0
  %1751 = vmatpush1.msra.mxu0 %v1737
  %1752 = vmatprep.subr.mxu0 0.0
  %1753 = vmatpush1.msra.mxu0 0.0
  %1754 = vmatprep.subr.mxu0 0.0
  %1755 = vmatpush1.msra.mxu0 0.0
  %1756 = vmatprep.subr.mxu0 0.0
  %1757 = vmatpush1.msra.mxu0 0.0
  %1758 = vmatprep.subr.mxu0 0.0
  %1759 = vmatpush1.msra.mxu0 0.0
  %1760 = vmatprep.subr.mxu0 0.0
  %1761 = vmatpush1.msra.mxu0 0.0
  %1762 = vmatprep.subr.mxu0 0.0
  %1763 = vmatpush1.msra.mxu0 0.0
  %1764 = vmatprep.subr.mxu0 0.0
  %1765 = vmatpush1.msra.mxu0 0.0
  %1766 = vmatprep.subr.mxu0 0.0
  %1767 = vmatpush1.msra.mxu0 0.0
  %1768 = vmatprep.subr.mxu0 0.0
  %1769 = vmatpush1.msra.mxu0 0.0
  %1770 = vmatprep.subr.mxu0 0.0
  %1771 = vmatpush1.msra.mxu0 0.0
  %1772 = vmatprep.subr.mxu0 0.0
  %1773 = vmatpush1.msra.mxu0 0.0
  %1774 = vmatprep.subr.mxu0 0.0
  %1775 = vmatpush1.msra.mxu0 0.0
  %1776 = vmatprep.subr.mxu0 0.0
  %1777 = vmatpush1.msra.mxu0 0.0
  %1778 = vmatprep.subr.mxu0 0.0
  %1779 = vmatpush1.msra.mxu0 0.0
  %1780 = vmatprep.subr.mxu0 0.0
  %1781 = vmatpush1.msra.mxu0 0.0
  %1782 = vmatprep.subr.mxu0 0.0
  %1783 = vmatpush1.msra.mxu0 0.0
  %1784 = vmatprep.subr.mxu0 0.0
  %1785 = vmatpush1.msra.mxu0 0.0
  %1786 = vmatprep.subr.mxu0 0.0
  %1787 = vmatpush1.msra.mxu0 0.0
  %1788 = vmatprep.subr.mxu0 0.0
  %1789 = vmatpush1.msra.mxu0 0.0
  %1790 = vmatprep.subr.mxu0 0.0
  %1791 = vmatpush1.msra.mxu0 0.0
  %1792 = vmatprep.subr.mxu0 0.0
  %1793 = vmatpush1.msra.mxu0 0.0
  %1794 = vmatprep.subr.mxu0 0.0
  %1795 = vmatpush1.msra.mxu0 0.0
  %1796 = vmatprep.subr.mxu0 0.0
  %1797 = vmatpush1.msra.mxu0 0.0
  %1798 = vmatprep.subr.mxu0 0.0
  %1799 = vmatpush1.msra.mxu0 0.0
  %1800 = vmatprep.subr.mxu0 0.0
  %1801 = vmatpush1.msra.mxu0 0.0
  %1802 = vmatprep.subr.mxu0 0.0
  %1803 = vmatpush1.msra.mxu0 0.0
  %1804 = vmatprep.subr.mxu0 0.0
  %1805 = vmatpush1.msra.mxu0 0.0
  %1806 = vmatprep.subr.mxu0 0.0
  %1807 = vmatpush1.msra.mxu0 0.0
  %1808 = vmatprep.subr.mxu0 0.0
  %1809 = vmatpush1.msra.mxu0 0.0
  %1810 = vmatprep.subr.mxu0 0.0
  %1811 = vmatpush1.msra.mxu0 0.0
  %1812 = vmatprep.subr.mxu0 0.0
  %1813 = vmatpush1.msra.mxu0 0.0
  %1814 = vmatprep.mubr.f32.mxu0 0.0
  %1815 = vmatmul.mubr.f32.gmra.mrb[0].mxu0 %v1739
  %v1816 = vpop.f32.mrb[0].mxu0
  %v1817 = vadd.f32 0.0, %v1816
  %v1818 = vpop.f32.mrb[0].mxu0
  %1819 = vmatprep.mubr.f32.mxu0 0.0
  %1820 = vmatmul.mubr.f32.gmra.mrb[0].mxu0 %v1742
  %v1821 = vpop.f32.mrb[0].mxu0
  %v1822 = vadd.f32 0.0, %v1821
  %v1823 = vpop.f32.mrb[0].mxu0
  %1824 = vmatprep.mubr.f32.mxu0 0.0
  %1825 = vmatmul.mubr.f32.gmra.mrb[0].mxu0 %v1745
  %v1826 = vpop.f32.mrb[0].mxu0
  %v1827 = vadd.f32 0.0, %v1826
  %v1828 = vpop.f32.mrb[0].mxu0
  %1829 = vmatprep.mubr.f32.mxu0 0.0
  %1830 = vmatmul.mubr.f32.gmra.mrb[0].mxu0 %v1748
  %v1831 = vpop.f32.mrb[0].mxu0
  %v1832 = vadd.f32 0.0, %v1831
  %v1833 = vpop.f32.mrb[0].mxu0
  %1834 = vdwg.mxu0
  %v1835 = vmul.f32 %v1817, 0.5
  %v1836 = vmul.f32 %v1822, 0.5
  %v1837 = vmul.f32 %v1827, 0.5
  %v1838 = vmul.f32 %v1832, 0.5
  %v1839 = vtanh.pop %v1835
  %v1840 = vtanh.pop %v1836
  %v1841 = vtanh.pop %v1837
  %v1842 = vtanh.pop %v1838
  %v1843 = vadd.f32 %v1839, 1.0
  %v1844 = vadd.f32 %v1840, 1.0
  %v1845 = vadd.f32 %v1841, 1.0
  %v1846 = vadd.f32 %v1842, 1.0
  %v1847 = vmul.f32 %v1843, 0.5
  %v1848 = vmul.f32 %v1844, 0.5
  %v1849 = vmul.f32 %v1845, 0.5
  %v1850 = vmul.f32 %v1846, 0.5
  %v1851 = vsel %vm993, %v1644, -inf
  %1852 = vmax.xlane.f32.xlu0 %v1851
  %v1853 = vpop.xlane.xlu0 %1852
  %v1854 = vsel %vm993, %v1645, -inf
  %1855 = vmax.xlane.f32.xlu0 %v1854
  %v1856 = vpop.xlane.xlu0 %1855
  %v1857 = vsel %vm993, %v1646, -inf
  %1858 = vmax.xlane.f32.xlu0 %v1857
  %v1859 = vpop.xlane.xlu0 %1858
  %v1860 = vsel %vm993, %v1647, -inf
  %1861 = vmax.xlane.f32.xlu0 %v1860
  %v1862 = vpop.xlane.xlu0 %1861
  %v1863 = vsub.f32 %v1644, %v1853
  %v1864 = vsub.f32 %v1645, %v1856
  %v1865 = vsub.f32 %v1646, %v1859
  %v1866 = vsub.f32 %v1647, %v1862
  %v1867 = vmul.f32 %v1863, 1.442695
  %v1868 = vpow.pop %v1867
  %v1869 = vmul.f32 %v1864, 1.442695
  %v1870 = vpow.pop %v1869
  %v1871 = vmul.f32 %v1865, 1.442695
  %v1872 = vpow.pop %v1871
  %v1873 = vmul.f32 %v1866, 1.442695
  %v1874 = vpow.pop %v1873
  %v1875 = vsel %vm993, %v1868, 0.0
  %1876 = vadd.xlane.f32.xlu0 %v1875
  %v1877 = vpop.xlane.xlu0 %1876
  %v1878 = vsel %vm993, %v1870, 0.0
  %1879 = vadd.xlane.f32.xlu0 %v1878
  %v1880 = vpop.xlane.xlu0 %1879
  %v1881 = vsel %vm993, %v1872, 0.0
  %1882 = vadd.xlane.f32.xlu0 %v1881
  %v1883 = vpop.xlane.xlu0 %1882
  %v1884 = vsel %vm993, %v1874, 0.0
  %1885 = vadd.xlane.f32.xlu0 %v1884
  %v1886 = vpop.xlane.xlu0 %1885
  %v1887 = vrcp.pop %v1877
  %v1888 = vrcp.pop %v1880
  %v1889 = vrcp.pop %v1883
  %v1890 = vrcp.pop %v1886
  %v1891 = vmul.f32 %v1868, %v1887
  %v1892 = vmul.f32 %v1870, %v1888
  %v1893 = vmul.f32 %v1872, %v1889
  %v1894 = vmul.f32 %v1874, %v1890
  %v1896 = vsel %vm1011, %v1528, 0
  %1898 = vmatprep.subr.mxu0 0.0
  %1899 = vmatpush1.msra.mxu0 %v1891
  %1900 = vmatprep.subr.mxu0 0.0
  %1901 = vmatpush1.msra.mxu0 %v1892
  %1902 = vmatprep.subr.mxu0 0.0
  %1903 = vmatpush1.msra.mxu0 %v1893
  %1904 = vmatprep.subr.mxu0 0.0
  %1905 = vmatpush1.msra.mxu0 %v1894
  %1906 = vmatprep.subr.mxu0 0.0
  %1907 = vmatpush1.msra.mxu0 0.0
  %1908 = vmatprep.subr.mxu0 0.0
  %1909 = vmatpush1.msra.mxu0 0.0
  %1910 = vmatprep.subr.mxu0 0.0
  %1911 = vmatpush1.msra.mxu0 0.0
  %1912 = vmatprep.subr.mxu0 0.0
  %1913 = vmatpush1.msra.mxu0 0.0
  %1914 = vmatprep.subr.mxu0 0.0
  %1915 = vmatpush1.msra.mxu0 0.0
  %1916 = vmatprep.subr.mxu0 0.0
  %1917 = vmatpush1.msra.mxu0 0.0
  %1918 = vmatprep.subr.mxu0 0.0
  %1919 = vmatpush1.msra.mxu0 0.0
  %1920 = vmatprep.subr.mxu0 0.0
  %1921 = vmatpush1.msra.mxu0 0.0
  %1922 = vmatprep.subr.mxu0 0.0
  %1923 = vmatpush1.msra.mxu0 0.0
  %1924 = vmatprep.subr.mxu0 0.0
  %1925 = vmatpush1.msra.mxu0 0.0
  %1926 = vmatprep.subr.mxu0 0.0
  %1927 = vmatpush1.msra.mxu0 0.0
  %1928 = vmatprep.subr.mxu0 0.0
  %1929 = vmatpush1.msra.mxu0 0.0
  %1930 = vmatprep.subr.mxu0 0.0
  %1931 = vmatpush1.msra.mxu0 0.0
  %1932 = vmatprep.subr.mxu0 0.0
  %1933 = vmatpush1.msra.mxu0 0.0
  %1934 = vmatprep.subr.mxu0 0.0
  %1935 = vmatpush1.msra.mxu0 0.0
  %1936 = vmatprep.subr.mxu0 0.0
  %1937 = vmatpush1.msra.mxu0 0.0
  %1938 = vmatprep.subr.mxu0 0.0
  %1939 = vmatpush1.msra.mxu0 0.0
  %1940 = vmatprep.subr.mxu0 0.0
  %1941 = vmatpush1.msra.mxu0 0.0
  %1942 = vmatprep.subr.mxu0 0.0
  %1943 = vmatpush1.msra.mxu0 0.0
  %1944 = vmatprep.subr.mxu0 0.0
  %1945 = vmatpush1.msra.mxu0 0.0
  %1946 = vmatprep.subr.mxu0 0.0
  %1947 = vmatpush1.msra.mxu0 0.0
  %1948 = vmatprep.subr.mxu0 0.0
  %1949 = vmatpush1.msra.mxu0 0.0
  %1950 = vmatprep.subr.mxu0 0.0
  %1951 = vmatpush1.msra.mxu0 0.0
  %1952 = vmatprep.subr.mxu0 0.0
  %1953 = vmatpush1.msra.mxu0 0.0
  %1954 = vmatprep.subr.mxu0 0.0
  %1955 = vmatpush1.msra.mxu0 0.0
  %1956 = vmatprep.subr.mxu0 0.0
  %1957 = vmatpush1.msra.mxu0 0.0
  %1958 = vmatprep.subr.mxu0 0.0
  %1959 = vmatpush1.msra.mxu0 0.0
  %1960 = vmatprep.subr.mxu0 0.0
  %1961 = vmatpush1.msra.mxu0 0.0
  %1962 = vmatprep.mubr.f32.mxu0 0.0
  %1963 = vmatmul.mubr.f32.gmra.mrb[0].mxu0 %v1896
  %v1964 = vpop.f32.mrb[0].mxu0
  %v1965 = vadd.f32 0.0, %v1964
  %v1966 = vpop.f32.mrb[0].mxu0
  %1967 = vdwg.mxu0
  %1969 = vset.pattern.permute.xlu0 0
  %1970 = vperm.xlu0 %1969, %v1847
  %v1971 = vpop.permute.xlu0 %1970
  %1974 = vset.pattern.permute.xlu0 0
  %1975 = vperm.xlu0 %1974, %v1848
  %v1976 = vpop.permute.xlu0 %1975
  %1979 = vset.pattern.permute.xlu0 0
  %1980 = vperm.xlu0 %1979, %v1849
  %v1981 = vpop.permute.xlu0 %1980
  %1984 = vset.pattern.permute.xlu0 0
  %1985 = vperm.xlu0 %1984, %v1850
  %v1986 = vpop.permute.xlu0 %1985
  %v1988 = vmul.f32 %v1511, %v1971
  %v1989 = vmul.f32 %v1512, %v1976
  %v1990 = vmul.f32 %v1513, %v1981
  %v1991 = vmul.f32 %v1514, %v1986
  %v1992 = vadd.f32 %v1988, %v1345
  %v1993 = vadd.f32 %v1989, %v1346
  %v1994 = vadd.f32 %v1990, %v1347
  %v1995 = vadd.f32 %v1991, %v1348
  %v1996 = vmax.f32 %v1992, 0.0
  %v1997 = vmax.f32 %v1993, 0.0
  %v1998 = vmax.f32 %v1994, 0.0
  %v1999 = vmax.f32 %v1995, 0.0
  %2000 = vst.msk [vmem:[%s10] sm:$0xff] %vm872, %v1996
  %2001 = vst.msk [vmem:[%s10 + $0x8] sm:$0xff] %vm872, %v1997
  %2002 = vst.msk [vmem:[%s10 + $0x10] sm:$0xff] %vm872, %v1998
  %2003 = vst.msk [vmem:[%s10 + $0x18] sm:$0xff] %vm872, %v1999
  %v2004 = vld [vmem:[%s5 + $0x80] sm:$0xff]
  %v2005 = vld [vmem:[%s5 + $0x88] sm:$0xff]
  %v2006 = vld [vmem:[%s5 + $0x90] sm:$0xff]
  %v2007 = vld [vmem:[%s5 + $0x98] sm:$0xff]
  %v2008 = vld [vmem:[%s5 + $0xa0] sm:$0xff]
  %v2009 = vld [vmem:[%s5 + $0xa8] sm:$0xff]
  %v2010 = vld [vmem:[%s5 + $0xb0] sm:$0x3f]
  %v2011 = vld [vmem:[%s5 + $0xb8] sm:$0x3f]
  %v2013 = vsel %vm872, %v1996, 0
  %v2016 = vsel %vm872, %v1997, 0
  %v2019 = vsel %vm872, %v1998, 0
  %v2022 = vsel %vm872, %v1999, 0
  %v2025 = vsel %vm885, %v2010, 0
  %v2028 = vsel %vm885, %v2011, 0
  %2030 = vmatprep.subr.mxu0 %v2005
  %2031 = vmatpush1.msra.mxu0 %v2004
  %2032 = vmatprep.subr.mxu0 %v2007
  %2033 = vmatpush1.msra.mxu0 %v2006
  %2034 = vmatprep.subr.mxu0 %v2009
  %2035 = vmatpush1.msra.mxu0 %v2008
  %2036 = vmatprep.subr.mxu0 %v2028
  %2037 = vmatpush1.msra.mxu0 %v2025
  %2038 = vmatprep.subr.mxu0 0.0
  %2039 = vmatpush1.msra.mxu0 0.0
  %2040 = vmatprep.subr.mxu0 0.0
  %2041 = vmatpush1.msra.mxu0 0.0
  %2042 = vmatprep.subr.mxu0 0.0
  %2043 = vmatpush1.msra.mxu0 0.0
  %2044 = vmatprep.subr.mxu0 0.0
  %2045 = vmatpush1.msra.mxu0 0.0
  %2046 = vmatprep.subr.mxu0 0.0
  %2047 = vmatpush1.msra.mxu0 0.0
  %2048 = vmatprep.subr.mxu0 0.0
  %2049 = vmatpush1.msra.mxu0 0.0
  %2050 = vmatprep.subr.mxu0 0.0
  %2051 = vmatpush1.msra.mxu0 0.0
  %2052 = vmatprep.subr.mxu0 0.0
  %2053 = vmatpush1.msra.mxu0 0.0
  %2054 = vmatprep.subr.mxu0 0.0
  %2055 = vmatpush1.msra.mxu0 0.0
  %2056 = vmatprep.subr.mxu0 0.0
  %2057 = vmatpush1.msra.mxu0 0.0
  %2058 = vmatprep.subr.mxu0 0.0
  %2059 = vmatpush1.msra.mxu0 0.0
  %2060 = vmatprep.subr.mxu0 0.0
  %2061 = vmatpush1.msra.mxu0 0.0
  %2062 = vmatprep.subr.mxu0 0.0
  %2063 = vmatpush1.msra.mxu0 0.0
  %2064 = vmatprep.subr.mxu0 0.0
  %2065 = vmatpush1.msra.mxu0 0.0
  %2066 = vmatprep.subr.mxu0 0.0
  %2067 = vmatpush1.msra.mxu0 0.0
  %2068 = vmatprep.subr.mxu0 0.0
  %2069 = vmatpush1.msra.mxu0 0.0
  %2070 = vmatprep.subr.mxu0 0.0
  %2071 = vmatpush1.msra.mxu0 0.0
  %2072 = vmatprep.subr.mxu0 0.0
  %2073 = vmatpush1.msra.mxu0 0.0
  %2074 = vmatprep.subr.mxu0 0.0
  %2075 = vmatpush1.msra.mxu0 0.0
  %2076 = vmatprep.subr.mxu0 0.0
  %2077 = vmatpush1.msra.mxu0 0.0
  %2078 = vmatprep.subr.mxu0 0.0
  %2079 = vmatpush1.msra.mxu0 0.0
  %2080 = vmatprep.subr.mxu0 0.0
  %2081 = vmatpush1.msra.mxu0 0.0
  %2082 = vmatprep.subr.mxu0 0.0
  %2083 = vmatpush1.msra.mxu0 0.0
  %2084 = vmatprep.subr.mxu0 0.0
  %2085 = vmatpush1.msra.mxu0 0.0
  %2086 = vmatprep.subr.mxu0 0.0
  %2087 = vmatpush1.msra.mxu0 0.0
  %2088 = vmatprep.subr.mxu0 0.0
  %2089 = vmatpush1.msra.mxu0 0.0
  %2090 = vmatprep.subr.mxu0 0.0
  %2091 = vmatpush1.msra.mxu0 0.0
  %2092 = vmatprep.subr.mxu0 0.0
  %2093 = vmatpush1.msra.mxu0 0.0
  %2094 = vmatprep.mubr.f32.mxu0 0.0
  %2095 = vmatmul.mubr.f32.gmra.mrb[0].mxu0 %v2013
  %v2096 = vpop.f32.mrb[0].mxu0
  %v2097 = vadd.f32 0.0, %v2096
  %v2098 = vpop.f32.mrb[0].mxu0
  %v2099 = vadd.f32 0.0, %v2098
  %2100 = vmatprep.mubr.f32.mxu0 0.0
  %2101 = vmatmul.mubr.f32.gmra.mrb[0].mxu0 %v2016
  %v2102 = vpop.f32.mrb[0].mxu0
  %v2103 = vadd.f32 0.0, %v2102
  %v2104 = vpop.f32.mrb[0].mxu0
  %v2105 = vadd.f32 0.0, %v2104
  %2106 = vmatprep.mubr.f32.mxu0 0.0
  %2107 = vmatmul.mubr.f32.gmra.mrb[0].mxu0 %v2019
  %v2108 = vpop.f32.mrb[0].mxu0
  %v2109 = vadd.f32 0.0, %v2108
  %v2110 = vpop.f32.mrb[0].mxu0
  %v2111 = vadd.f32 0.0, %v2110
  %2112 = vmatprep.mubr.f32.mxu0 0.0
  %2113 = vmatmul.mubr.f32.gmra.mrb[0].mxu0 %v2022
  %v2114 = vpop.f32.mrb[0].mxu0
  %v2115 = vadd.f32 0.0, %v2114
  %v2116 = vpop.f32.mrb[0].mxu0
  %v2117 = vadd.f32 0.0, %v2116
  %2118 = vdwg.mxu0
  %v2119 = vld [vmem:[%s5 + $0xc0] sm:$0xff]
  %v2120 = vld [vmem:[%s5 + $0xc8] sm:$0xff]
  %v2121 = vld [vmem:[%s5 + $0xd0] sm:$0xff]
  %v2122 = vld [vmem:[%s5 + $0xd8] sm:$0xff]
  %v2123 = vld [vmem:[%s5 + $0xe0] sm:$0xff]
  %v2124 = vld [vmem:[%s5 + $0xe8] sm:$0xff]
  %v2125 = vld [vmem:[%s5 + $0xf0] sm:$0xff]
  %v2126 = vld [vmem:[%s5 + $0xf8] sm:$0xff]
  %v2127 = vmul.f32 %v2097, %v2119
  %v2128 = vmul.f32 %v2099, %v2120
  %v2129 = vmul.f32 %v2103, %v2121
  %v2130 = vmul.f32 %v2105, %v2122
  %v2131 = vmul.f32 %v2109, %v2123
  %v2132 = vmul.f32 %v2111, %v2124
  %v2133 = vmul.f32 %v2115, %v2125
  %v2134 = vmul.f32 %v2117, %v2126
  %v2135 = vld [vmem:[%s7] sm:$0xff]
  %v2136 = vld [vmem:[%s7 + $0x8] sm:$0xff]
  %v2137 = vld [vmem:[%s7 + $0x10] sm:$0xff]
  %v2138 = vld [vmem:[%s7 + $0x18] sm:$0xff]
  %v2139 = vld [vmem:[%s7 + $0x20] sm:$0xff]
  %v2140 = vld [vmem:[%s7 + $0x28] sm:$0xff]
  %v2141 = vld [vmem:[%s7 + $0x30] sm:$0xff]
  %v2142 = vld [vmem:[%s7 + $0x38] sm:$0xff]
  %v2143 = vld [vmem:[%s7 + $0x40] sm:$0xff]
  %v2144 = vld [vmem:[%s7 + $0x48] sm:$0xff]
  %v2145 = vld [vmem:[%s7 + $0x50] sm:$0xff]
  %v2146 = vld [vmem:[%s7 + $0x58] sm:$0xff]
  %v2147 = vld [vmem:[%s7 + $0x60] sm:$0xff]
  %v2148 = vld [vmem:[%s7 + $0x68] sm:$0xff]
  %v2149 = vld [vmem:[%s7 + $0x70] sm:$0xff]
  %v2150 = vld [vmem:[%s7 + $0x78] sm:$0xff]
  %v2151 = vld [vmem:[%s7 + $0x80] sm:$0xff]
  %v2152 = vld [vmem:[%s7 + $0x88] sm:$0xff]
  %v2153 = vld [vmem:[%s7 + $0x90] sm:$0xff]
  %v2154 = vld [vmem:[%s7 + $0x98] sm:$0xff]
  %v2155 = vld [vmem:[%s7 + $0xa0] sm:$0xff]
  %v2156 = vld [vmem:[%s7 + $0xa8] sm:$0xff]
  %v2157 = vld [vmem:[%s7 + $0xb0] sm:$0xff]
  %v2158 = vld [vmem:[%s7 + $0xb8] sm:$0xff]
  %v2159 = vld [vmem:[%s7 + $0xc0] sm:$0xff]
  %v2160 = vld [vmem:[%s7 + $0xc8] sm:$0xff]
  %v2161 = vld [vmem:[%s7 + $0xd0] sm:$0xff]
  %v2162 = vld [vmem:[%s7 + $0xd8] sm:$0xff]
  %v2163 = vld [vmem:[%s7 + $0xe0] sm:$0xff]
  %v2164 = vld [vmem:[%s7 + $0xe8] sm:$0xff]
  %v2165 = vld [vmem:[%s7 + $0xf0] sm:$0xff]
  %v2166 = vld [vmem:[%s7 + $0xf8] sm:$0xff]
  %2167 = vmatprep.subr.mxu0 0.0
  %2168 = vmatpush1.msra.mxu0 %v2135
  %2169 = vmatprep.subr.mxu0 0.0
  %2170 = vmatpush1.msra.mxu0 %v2136
  %2171 = vmatprep.subr.mxu0 0.0
  %2172 = vmatpush1.msra.mxu0 %v2137
  %2173 = vmatprep.subr.mxu0 0.0
  %2174 = vmatpush1.msra.mxu0 %v2138
  %2175 = vmatprep.subr.mxu0 0.0
  %2176 = vmatpush1.msra.mxu0 %v2139
  %2177 = vmatprep.subr.mxu0 0.0
  %2178 = vmatpush1.msra.mxu0 %v2140
  %2179 = vmatprep.subr.mxu0 0.0
  %2180 = vmatpush1.msra.mxu0 %v2141
  %2181 = vmatprep.subr.mxu0 0.0
  %2182 = vmatpush1.msra.mxu0 %v2142
  %2183 = vmatprep.subr.mxu0 0.0
  %2184 = vmatpush1.msra.mxu0 %v2143
  %2185 = vmatprep.subr.mxu0 0.0
  %2186 = vmatpush1.msra.mxu0 %v2144
  %2187 = vmatprep.subr.mxu0 0.0
  %2188 = vmatpush1.msra.mxu0 %v2145
  %2189 = vmatprep.subr.mxu0 0.0
  %2190 = vmatpush1.msra.mxu0 %v2146
  %2191 = vmatprep.subr.mxu0 0.0
  %2192 = vmatpush1.msra.mxu0 %v2147
  %2193 = vmatprep.subr.mxu0 0.0
  %2194 = vmatpush1.msra.mxu0 %v2148
  %2195 = vmatprep.subr.mxu0 0.0
  %2196 = vmatpush1.msra.mxu0 %v2149
  %2197 = vmatprep.subr.mxu0 0.0
  %2198 = vmatpush1.msra.mxu0 %v2150
  %2199 = vmatprep.subr.mxu0 0.0
  %2200 = vmatpush1.msra.mxu0 %v2151
  %2201 = vmatprep.subr.mxu0 0.0
  %2202 = vmatpush1.msra.mxu0 %v2152
  %2203 = vmatprep.subr.mxu0 0.0
  %2204 = vmatpush1.msra.mxu0 %v2153
  %2205 = vmatprep.subr.mxu0 0.0
  %2206 = vmatpush1.msra.mxu0 %v2154
  %2207 = vmatprep.subr.mxu0 0.0
  %2208 = vmatpush1.msra.mxu0 %v2155
  %2209 = vmatprep.subr.mxu0 0.0
  %2210 = vmatpush1.msra.mxu0 %v2156
  %2211 = vmatprep.subr.mxu0 0.0
  %2212 = vmatpush1.msra.mxu0 %v2157
  %2213 = vmatprep.subr.mxu0 0.0
  %2214 = vmatpush1.msra.mxu0 %v2158
  %2215 = vmatprep.subr.mxu0 0.0
  %2216 = vmatpush1.msra.mxu0 %v2159
  %2217 = vmatprep.subr.mxu0 0.0
  %2218 = vmatpush1.msra.mxu0 %v2160
  %2219 = vmatprep.subr.mxu0 0.0
  %2220 = vmatpush1.msra.mxu0 %v2161
  %2221 = vmatprep.subr.mxu0 0.0
  %2222 = vmatpush1.msra.mxu0 %v2162
  %2223 = vmatprep.subr.mxu0 0.0
  %2224 = vmatpush1.msra.mxu0 %v2163
  %2225 = vmatprep.subr.mxu0 0.0
  %2226 = vmatpush1.msra.mxu0 %v2164
  %2227 = vmatprep.subr.mxu0 0.0
  %2228 = vmatpush1.msra.mxu0 %v2165
  %2229 = vmatprep.subr.mxu0 0.0
  %2230 = vmatpush1.msra.mxu0 %v2166
  %2231 = vmatprep.mubr.f32.mxu0 %v2128
  %2232 = vmatmul.mubr.f32.gmra.mrb[0].mxu0 %v2127
  %v2233 = vpop.f32.mrb[0].mxu0
  %v2234 = vadd.f32 0.0, %v2233
  %v2235 = vpop.f32.mrb[0].mxu0
  %2236 = vmatprep.mubr.f32.mxu0 %v2130
  %2237 = vmatmul.mubr.f32.gmra.mrb[0].mxu0 %v2129
  %v2238 = vpop.f32.mrb[0].mxu0
  %v2239 = vadd.f32 0.0, %v2238
  %v2240 = vpop.f32.mrb[0].mxu0
  %2241 = vmatprep.mubr.f32.mxu0 %v2132
  %2242 = vmatmul.mubr.f32.gmra.mrb[0].mxu0 %v2131
  %v2243 = vpop.f32.mrb[0].mxu0
  %v2244 = vadd.f32 0.0, %v2243
  %v2245 = vpop.f32.mrb[0].mxu0
  %2246 = vmatprep.mubr.f32.mxu0 %v2134
  %2247 = vmatmul.mubr.f32.gmra.mrb[0].mxu0 %v2133
  %v2248 = vpop.f32.mrb[0].mxu0
  %v2249 = vadd.f32 0.0, %v2248
  %v2250 = vpop.f32.mrb[0].mxu0
  %2251 = vdwg.mxu0
  %v2252 = vld [vmem:[%s6 + $0x20] sm:$0x3]
  %v2253 = vld [vmem:[%s7 + $0x150] sm:$0x1]
  %v2254 = vlaneseq
  %v2255 = vshrl.u32 %v2254, 7
  %v2256 = vsub.s32 0, %v2255
  %v2257 = vrot.slane %v2253, %v2256
  %v2259 = vsel %vm1011, %v2252, 0
  %2261 = vmatprep.subr.mxu0 0.0
  %2262 = vmatpush1.msra.mxu0 %v2234
  %2263 = vmatprep.subr.mxu0 0.0
  %2264 = vmatpush1.msra.mxu0 %v2239
  %2265 = vmatprep.subr.mxu0 0.0
  %2266 = vmatpush1.msra.mxu0 %v2244
  %2267 = vmatprep.subr.mxu0 0.0
  %2268 = vmatpush1.msra.mxu0 %v2249
  %2269 = vmatprep.subr.mxu0 0.0
  %2270 = vmatpush1.msra.mxu0 0.0
  %2271 = vmatprep.subr.mxu0 0.0
  %2272 = vmatpush1.msra.mxu0 0.0
  %2273 = vmatprep.subr.mxu0 0.0
  %2274 = vmatpush1.msra.mxu0 0.0
  %2275 = vmatprep.subr.mxu0 0.0
  %2276 = vmatpush1.msra.mxu0 0.0
  %2277 = vmatprep.subr.mxu0 0.0
  %2278 = vmatpush1.msra.mxu0 0.0
  %2279 = vmatprep.subr.mxu0 0.0
  %2280 = vmatpush1.msra.mxu0 0.0
  %2281 = vmatprep.subr.mxu0 0.0
  %2282 = vmatpush1.msra.mxu0 0.0
  %2283 = vmatprep.subr.mxu0 0.0
  %2284 = vmatpush1.msra.mxu0 0.0
  %2285 = vmatprep.subr.mxu0 0.0
  %2286 = vmatpush1.msra.mxu0 0.0
  %2287 = vmatprep.subr.mxu0 0.0
  %2288 = vmatpush1.msra.mxu0 0.0
  %2289 = vmatprep.subr.mxu0 0.0
  %2290 = vmatpush1.msra.mxu0 0.0
  %2291 = vmatprep.subr.mxu0 0.0
  %2292 = vmatpush1.msra.mxu0 0.0
  %2293 = vmatprep.subr.mxu0 0.0
  %2294 = vmatpush1.msra.mxu0 0.0
  %2295 = vmatprep.subr.mxu0 0.0
  %2296 = vmatpush1.msra.mxu0 0.0
  %2297 = vmatprep.subr.mxu0 0.0
  %2298 = vmatpush1.msra.mxu0 0.0
  %2299 = vmatprep.subr.mxu0 0.0
  %2300 = vmatpush1.msra.mxu0 0.0
  %2301 = vmatprep.subr.mxu0 0.0
  %2302 = vmatpush1.msra.mxu0 0.0
  %2303 = vmatprep.subr.mxu0 0.0
  %2304 = vmatpush1.msra.mxu0 0.0
  %2305 = vmatprep.subr.mxu0 0.0
  %2306 = vmatpush1.msra.mxu0 0.0
  %2307 = vmatprep.subr.mxu0 0.0
  %2308 = vmatpush1.msra.mxu0 0.0
  %2309 = vmatprep.subr.mxu0 0.0
  %2310 = vmatpush1.msra.mxu0 0.0
  %2311 = vmatprep.subr.mxu0 0.0
  %2312 = vmatpush1.msra.mxu0 0.0
  %2313 = vmatprep.subr.mxu0 0.0
  %2314 = vmatpush1.msra.mxu0 0.0
  %2315 = vmatprep.subr.mxu0 0.0
  %2316 = vmatpush1.msra.mxu0 0.0
  %2317 = vmatprep.subr.mxu0 0.0
  %2318 = vmatpush1.msra.mxu0 0.0
  %2319 = vmatprep.subr.mxu0 0.0
  %2320 = vmatpush1.msra.mxu0 0.0
  %2321 = vmatprep.subr.mxu0 0.0
  %2322 = vmatpush1.msra.mxu0 0.0
  %2323 = vmatprep.subr.mxu0 0.0
  %2324 = vmatpush1.msra.mxu0 0.0
  %2325 = vmatprep.mubr.f32.mxu0 0.0
  %2326 = vmatmul.mubr.f32.gmra.mrb[0].mxu0 %v2259
  %v2327 = vpop.f32.mrb[0].mxu0
  %v2328 = vadd.f32 %v2257, %v2327
  %v2329 = vpop.f32.mrb[0].mxu0
  %2330 = vdwg.mxu0
  %v2331 = vld [vmem:[%s7 + $0x158] sm:$0x1]
  %v2332 = vmax.f32 %v1314, 0.0
  %v2333 = vld [vmem:[%s7 + $0x100] sm:$0xff]
  %v2334 = vld [vmem:[%s7 + $0x108] sm:$0xff]
  %v2335 = vld [vmem:[%s7 + $0x110] sm:$0xff]
  %v2336 = vld [vmem:[%s7 + $0x118] sm:$0xff]
  %v2337 = vld [vmem:[%s7 + $0x120] sm:$0xff]
  %v2339 = vsel %vm993, %v2332, 0
  %2341 = vmatprep.subr.mxu0 0.0
  %2342 = vmatpush1.msra.mxu0 %v2333
  %2343 = vmatprep.subr.mxu0 0.0
  %2344 = vmatpush1.msra.mxu0 %v2334
  %2345 = vmatprep.subr.mxu0 0.0
  %2346 = vmatpush1.msra.mxu0 %v2335
  %2347 = vmatprep.subr.mxu0 0.0
  %2348 = vmatpush1.msra.mxu0 %v2336
  %2349 = vmatprep.subr.mxu0 0.0
  %2350 = vmatpush1.msra.mxu0 %v2337
  %2351 = vmatprep.subr.mxu0 0.0
  %2352 = vmatpush1.msra.mxu0 0.0
  %2353 = vmatprep.subr.mxu0 0.0
  %2354 = vmatpush1.msra.mxu0 0.0
  %2355 = vmatprep.subr.mxu0 0.0
  %2356 = vmatpush1.msra.mxu0 0.0
  %2357 = vmatprep.subr.mxu0 0.0
  %2358 = vmatpush1.msra.mxu0 0.0
  %2359 = vmatprep.subr.mxu0 0.0
  %2360 = vmatpush1.msra.mxu0 0.0
  %2361 = vmatprep.subr.mxu0 0.0
  %2362 = vmatpush1.msra.mxu0 0.0
  %2363 = vmatprep.subr.mxu0 0.0
  %2364 = vmatpush1.msra.mxu0 0.0
  %2365 = vmatprep.subr.mxu0 0.0
  %2366 = vmatpush1.msra.mxu0 0.0
  %2367 = vmatprep.subr.mxu0 0.0
  %2368 = vmatpush1.msra.mxu0 0.0
  %2369 = vmatprep.subr.mxu0 0.0
  %2370 = vmatpush1.msra.mxu0 0.0
  %2371 = vmatprep.subr.mxu0 0.0
  %2372 = vmatpush1.msra.mxu0 0.0
  %2373 = vmatprep.subr.mxu0 0.0
  %2374 = vmatpush1.msra.mxu0 0.0
  %2375 = vmatprep.subr.mxu0 0.0
  %2376 = vmatpush1.msra.mxu0 0.0
  %2377 = vmatprep.subr.mxu0 0.0
  %2378 = vmatpush1.msra.mxu0 0.0
  %2379 = vmatprep.subr.mxu0 0.0
  %2380 = vmatpush1.msra.mxu0 0.0
  %2381 = vmatprep.subr.mxu0 0.0
  %2382 = vmatpush1.msra.mxu0 0.0
  %2383 = vmatprep.subr.mxu0 0.0
  %2384 = vmatpush1.msra.mxu0 0.0
  %2385 = vmatprep.subr.mxu0 0.0
  %2386 = vmatpush1.msra.mxu0 0.0
  %2387 = vmatprep.subr.mxu0 0.0
  %2388 = vmatpush1.msra.mxu0 0.0
  %2389 = vmatprep.subr.mxu0 0.0
  %2390 = vmatpush1.msra.mxu0 0.0
  %2391 = vmatprep.subr.mxu0 0.0
  %2392 = vmatpush1.msra.mxu0 0.0
  %2393 = vmatprep.subr.mxu0 0.0
  %2394 = vmatpush1.msra.mxu0 0.0
  %2395 = vmatprep.subr.mxu0 0.0
  %2396 = vmatpush1.msra.mxu0 0.0
  %2397 = vmatprep.subr.mxu0 0.0
  %2398 = vmatpush1.msra.mxu0 0.0
  %2399 = vmatprep.subr.mxu0 0.0
  %2400 = vmatpush1.msra.mxu0 0.0
  %2401 = vmatprep.subr.mxu0 0.0
  %2402 = vmatpush1.msra.mxu0 0.0
  %2403 = vmatprep.subr.mxu0 0.0
  %2404 = vmatpush1.msra.mxu0 0.0
  %2405 = vmatprep.mubr.f32.mxu0 0.0
  %2406 = vmatmul.mubr.f32.gmra.mrb[0].mxu0 %v2339
  %v2407 = vpop.f32.mrb[0].mxu0
  %v2408 = vadd.f32 0.0, %v2407
  %v2409 = vpop.f32.mrb[0].mxu0
  %2410 = vdwg.mxu0
  %v2411 = vlaneseq
  %v2412 = vshrl.u32 %v2411, 7
  %v2413 = vsub.s32 0, %v2412
  %v2414 = vrot.slane %v2331, %v2413
  %v2415 = vadd.f32 %v2414, %v2408
  %v2416 = vmax.f32 %v1965, 0.0
  %v2417 = vld [vmem:[%s7 + $0x128] sm:$0xff]
  %v2418 = vld [vmem:[%s7 + $0x130] sm:$0xff]
  %v2419 = vld [vmem:[%s7 + $0x138] sm:$0xff]
  %v2420 = vld [vmem:[%s7 + $0x140] sm:$0xff]
  %v2421 = vld [vmem:[%s7 + $0x148] sm:$0xff]
  %v2423 = vsel %vm993, %v2416, 0
  %2425 = vmatprep.subr.mxu0 0.0
  %2426 = vmatpush1.msra.mxu0 %v2417
  %2427 = vmatprep.subr.mxu0 0.0
  %2428 = vmatpush1.msra.mxu0 %v2418
  %2429 = vmatprep.subr.mxu0 0.0
  %2430 = vmatpush1.msra.mxu0 %v2419
  %2431 = vmatprep.subr.mxu0 0.0
  %2432 = vmatpush1.msra.mxu0 %v2420
  %2433 = vmatprep.subr.mxu0 0.0
  %2434 = vmatpush1.msra.mxu0 %v2421
  %2435 = vmatprep.subr.mxu0 0.0
  %2436 = vmatpush1.msra.mxu0 0.0
  %2437 = vmatprep.subr.mxu0 0.0
  %2438 = vmatpush1.msra.mxu0 0.0
  %2439 = vmatprep.subr.mxu0 0.0
  %2440 = vmatpush1.msra.mxu0 0.0
  %2441 = vmatprep.subr.mxu0 0.0
  %2442 = vmatpush1.msra.mxu0 0.0
  %2443 = vmatprep.subr.mxu0 0.0
  %2444 = vmatpush1.msra.mxu0 0.0
  %2445 = vmatprep.subr.mxu0 0.0
  %2446 = vmatpush1.msra.mxu0 0.0
  %2447 = vmatprep.subr.mxu0 0.0
  %2448 = vmatpush1.msra.mxu0 0.0
  %2449 = vmatprep.subr.mxu0 0.0
  %2450 = vmatpush1.msra.mxu0 0.0
  %2451 = vmatprep.subr.mxu0 0.0
  %2452 = vmatpush1.msra.mxu0 0.0
  %2453 = vmatprep.subr.mxu0 0.0
  %2454 = vmatpush1.msra.mxu0 0.0
  %2455 = vmatprep.subr.mxu0 0.0
  %2456 = vmatpush1.msra.mxu0 0.0
  %2457 = vmatprep.subr.mxu0 0.0
  %2458 = vmatpush1.msra.mxu0 0.0
  %2459 = vmatprep.subr.mxu0 0.0
  %2460 = vmatpush1.msra.mxu0 0.0
  %2461 = vmatprep.subr.mxu0 0.0
  %2462 = vmatpush1.msra.mxu0 0.0
  %2463 = vmatprep.subr.mxu0 0.0
  %2464 = vmatpush1.msra.mxu0 0.0
  %2465 = vmatprep.subr.mxu0 0.0
  %2466 = vmatpush1.msra.mxu0 0.0
  %2467 = vmatprep.subr.mxu0 0.0
  %2468 = vmatpush1.msra.mxu0 0.0
  %2469 = vmatprep.subr.mxu0 0.0
  %2470 = vmatpush1.msra.mxu0 0.0
  %2471 = vmatprep.subr.mxu0 0.0
  %2472 = vmatpush1.msra.mxu0 0.0
  %2473 = vmatprep.subr.mxu0 0.0
  %2474 = vmatpush1.msra.mxu0 0.0
  %2475 = vmatprep.subr.mxu0 0.0
  %2476 = vmatpush1.msra.mxu0 0.0
  %2477 = vmatprep.subr.mxu0 0.0
  %2478 = vmatpush1.msra.mxu0 0.0
  %2479 = vmatprep.subr.mxu0 0.0
  %2480 = vmatpush1.msra.mxu0 0.0
  %2481 = vmatprep.subr.mxu0 0.0
  %2482 = vmatpush1.msra.mxu0 0.0
  %2483 = vmatprep.subr.mxu0 0.0
  %2484 = vmatpush1.msra.mxu0 0.0
  %2485 = vmatprep.subr.mxu0 0.0
  %2486 = vmatpush1.msra.mxu0 0.0
  %2487 = vmatprep.subr.mxu0 0.0
  %2488 = vmatpush1.msra.mxu0 0.0
  %2489 = vmatprep.mubr.f32.mxu0 0.0
  %2490 = vmatmul.mubr.f32.gmra.mrb[0].mxu0 %v2423
  %v2491 = vpop.f32.mrb[0].mxu0
  %v2492 = vadd.f32 0.0, %v2491
  %v2493 = vpop.f32.mrb[0].mxu0
  %2494 = vdwg.mxu0
  %v2495 = vadd.f32 %v2415, %v2492
  %vm2496 = vcmask 123904
  %2497 = vst.msk [vmem:[%s9] sm:$0x3] %vm2496, %v2328
  %2499 = vrot.lane.b32.xlu0 %v2495, 16
  %v2500 = vpop.permute.xlu0 %2499
  %vm2502 = vcmask 255104
  %2503 = vst.msk [vmem:[%s9] sm:$0x3] %vm2502, %v2500
  // Predicated region
  $region38: #{g_net_forward.1} parent=0 // pred_check
    _
  $region39: #{g_net_forward.1} parent=0 // pred_check_branch
    %2505 = sbr.rel (0) target = $region41
  $region40: #{g_net_forward.1} parent=0 // pred_region
    _
  $region41: #{g_net_forward.1} parent=0 // pred_fallthru
    _
  // Predicated region
  $region42: #{g_net_forward.1} parent=0 // pred_check
    _
  $region43: #{g_net_forward.1} parent=0 // pred_check_branch
    %2507 = sbr.rel (0) target = $region45
  $region44: #{g_net_forward.1} parent=0 // pred_region
    _
  $region45: #{g_net_forward.1} parent=0 // pred_fallthru
    _
  // Predicated region
  $region46: #{g_net_forward.1} parent=0 // pred_check
    _
  $region47: #{g_net_forward.1} parent=0 // pred_check_branch
    %2509 = sbr.rel (0) target = $region49
  $region48: #{g_net_forward.1} parent=0 // pred_region
    _
  $region49: #{g_net_forward.1} parent=0 // pred_fallthru
    _
  // Predicated region
  $region50: #{g_net_forward.1} parent=0 // pred_check
    _
  $region51: #{g_net_forward.1} parent=0 // pred_check_branch
    %2511 = sbr.rel (0) target = $region53
  $region52: #{g_net_forward.1} parent=0 // pred_region
    _
  $region53: #{g_net_forward.1} parent=0 // pred_fallthru
    _

</llo_original>
